<compile_context>
chip_gen: v7x
topology: tpu7x:2x2x1
jax: 0.10.0
libtpu: 0.0.40
codegen_flags: <defaults>
</compile_context>

<pallas_src>
import math

import jax
import jax.numpy as jnp
from jax import lax
from jax.experimental import pallas as pl
from jax.experimental.pallas import tpu as pltpu


def _make_kernel(with_att):
    def kernel(xf_ref, vf_ref, wq_ref, bq_ref, wk_ref, bk_ref, wv_ref, bv_ref,
               *out_and_scratch):
        # in refs (channel-major):
        #   xf_ref: (1, C,  N)   full x for this batch
        #   vf_ref: (1, Ck, N)   full v for this batch
        #   wq_ref: (C8p, C)  bq_ref: (C8p, 1)   (1/sqrt(C//8) folded in)
        #   wk_ref: (C8p, Ck) bk_ref: (C8p, 1)
        #   wv_ref: (C, C)    bv_ref: (C, 1)
        # out refs: out (1, C, TQ) [+ att (1, TQ, N)]
        # scratch:  q_s (C8p, N), k_s (C8p, N), v_s (C, N)   (per-batch hoisted)
        if with_att:
            out_ref, att_ref, q_s, k_s, v_s = out_and_scratch
        else:
            out_ref, q_s, k_s, v_s = out_and_scratch
            att_ref = None

        f32 = jnp.float32
        TQ = out_ref.shape[2]

        # ---- per-batch hoist: 1x1-conv projections computed once, reused by
        # every query tile of this batch (q grid axis is "arbitrary").
        @pl.when(pl.program_id(1) == 0)
        def _():
            x_full = xf_ref[0]                                   # (C, N)
            v_full = vf_ref[0]                                   # (Ck, N)
            q_s[...] = (jnp.dot(wq_ref[...], x_full, preferred_element_type=f32)
                        + bq_ref[...]).astype(q_s.dtype)         # (C8p, N)
            k_s[...] = (jnp.dot(wk_ref[...], v_full, preferred_element_type=f32)
                        + bk_ref[...]).astype(k_s.dtype)         # (C8p, N)
            v_s[...] = (jnp.dot(wv_ref[...], x_full, preferred_element_type=f32)
                        + bv_ref[...]).astype(v_s.dtype)         # (C, N)

        # ---- per-query-tile attention.
        start = pl.multiple_of(pl.program_id(1) * TQ, TQ)
        q_tile = q_s[:, pl.ds(start, TQ)]                        # (C8p, TQ)

        # energy[i, j] = sum_c q[c, i] * k[c, j]   (scale already folded into q)
        energy = lax.dot_general(q_tile, k_s[...], (((0,), (0,)), ((), ())),
                                 preferred_element_type=f32)     # (TQ, N)

        # Row-wise softmax in f32; approx reciprocal runs on the EUP.
        m = jnp.max(energy, axis=-1, keepdims=True)
        p = jnp.exp(energy - m)
        denom = jnp.sum(p, axis=-1, keepdims=True)
        att = p * pl.reciprocal(denom, approx=True)              # (TQ, N) f32

        # out[c, i] = sum_j val[c, j] * att[i, j]   (== bmm(V, att^T) in NC layout)
        out = lax.dot_general(v_s[...], att.astype(v_s.dtype),
                              (((1,), (1,)), ((), ())),
                              preferred_element_type=f32)        # (C, TQ)
        out_ref[0] = out.astype(out_ref.dtype)
        if att_ref is not None:
            att_ref[0] = att.astype(att_ref.dtype)

    return kernel


def _vmem_capacity_bytes():
    try:
        cap = getattr(pltpu.get_tpu_info(), "vmem_capacity_bytes", None)
        if cap:
            return int(cap)
    except Exception:
        pass
    return 64 * 1024 * 1024   # conservative fallback (v7x per-TensorCore)


def _estimate_vmem_bytes(C, Ck, C8p, N, TQ, cd_b, out_b, att_b, with_att):
    f32 = 4
    weights = (C8p * (C + Ck + 2) + C * (C + 1)) * cd_b
    ins = (C + Ck) * N * cd_b                        # full x / v slabs
    outs = C * TQ * out_b + (TQ * N * att_b if with_att else 0)
    scratch = (2 * C8p + C) * N * cd_b               # hoisted q / k / v projections
    interm = (3 * TQ * N + C * TQ) * f32             # energy, exp, att + out tile
    interm += (2 * C8p + C) * N * f32                # f32 pre-cast peak in the hoist step
    return 2 * (weights + ins + outs) + scratch + interm   # 2x: double-buffered pipeline


def _pick_block_q(N, requested, fits):
    if requested is not None:
        if N % requested != 0:
            raise ValueError(f"block_q={requested} must divide N={N}")
        return requested
    if N <= 128:
        return N
    candidates = [t for t in (512, 384, 256, 128) if N % t == 0]
    if not candidates:
        # TODO(synk): ragged N (not a multiple of 128) falls back to one full-row tile.
        return N
    for tq in candidates:           # biggest tile that fits the VMEM budget
        if fits(tq):
            return tq
    return candidates[-1]


def self_attn_pallas(x, v, params, *, block_q=None, compute_dtype=jnp.bfloat16,
                     out_dtype=None, att_dtype=None, return_attention=True):
    """x: (B, C, W, H), v: (B, Ck, W, H).
    Returns (out NCHW, attention (B, N, N)); just `out` if return_attention=False."""
    B, C, W, H = x.shape
    _, Ck, _, _ = v.shape
    N = W * H
    C8 = params["wq"].shape[0]
    scale = 1.0 / math.sqrt(C8)

    cd = jnp.dtype(compute_dtype)
    out_dtype = jnp.dtype(out_dtype) if out_dtype is not None else x.dtype
    att_dtype = jnp.dtype(att_dtype) if att_dtype is not None else cd

    # Pad C//8 to the dtype's sublane-packing multiple (bf16 packs 16 rows/vreg).
    pad = 16 if cd.itemsize == 2 else 8
    C8p = max(pad, -(-C8 // pad) * pad)

    cap = _vmem_capacity_bytes()
    budget = (cap * 3) // 4

    def fits(tq):
        return _estimate_vmem_bytes(C, Ck, C8p, N, tq, cd.itemsize,
                                    out_dtype.itemsize, att_dtype.itemsize,
                                    return_attention) <= budget

    TQ = _pick_block_q(N, block_q, fits)
    NQ = N // TQ

    # NCHW -> channel-major (B, C, N): pure reshape, no transpose.
    x_cm = x.reshape(B, C, N).astype(cd)
    v_cm = v.reshape(B, Ck, N).astype(cd)

    # Zero-pad C//8 rows (they contribute exactly zero to the energy
    # contraction) and fold the 1/sqrt(C//8) scale into the query weights/bias.
    wq_p = jnp.zeros((C8p, C), cd).at[:C8].set((params["wq"] * scale).astype(cd))
    bq_p = jnp.zeros((C8p, 1), cd).at[:C8, 0].set((params["bq"] * scale).astype(cd))
    wk_p = jnp.zeros((C8p, Ck), cd).at[:C8].set(params["wk"].astype(cd))
    bk_p = jnp.zeros((C8p, 1), cd).at[:C8, 0].set(params["bk"].astype(cd))
    wv = params["wv"].astype(cd)
    bv = params["bv"].reshape(C, 1).astype(cd)

    est = _estimate_vmem_bytes(C, Ck, C8p, N, TQ, cd.itemsize, out_dtype.itemsize,
                               att_dtype.itemsize, return_attention)
    vmem_limit = int(min(cap - cap // 8, max(est, 32 * 1024 * 1024)))

    out_shapes = [jax.ShapeDtypeStruct((B, C, N), out_dtype)]
    out_specs = [pl.BlockSpec((1, C, TQ), lambda b, q: (b, 0, q))]
    if return_attention:
        out_shapes.append(jax.ShapeDtypeStruct((B, N, N), att_dtype))
        out_specs.append(pl.BlockSpec((1, TQ, N), lambda b, q: (b, q, 0)))

    results = pl.pallas_call(
        _make_kernel(return_attention),
        out_shape=tuple(out_shapes),
        grid=(B, NQ),
        in_specs=[
            pl.BlockSpec((1, C, N), lambda b, q: (b, 0, 0)),    # x (full, per batch)
            pl.BlockSpec((1, Ck, N), lambda b, q: (b, 0, 0)),   # v (full, per batch)
            pl.BlockSpec((C8p, C), lambda b, q: (0, 0)),
            pl.BlockSpec((C8p, 1), lambda b, q: (0, 0)),
            pl.BlockSpec((C8p, Ck), lambda b, q: (0, 0)),
            pl.BlockSpec((C8p, 1), lambda b, q: (0, 0)),
            pl.BlockSpec((C, C), lambda b, q: (0, 0)),
            pl.BlockSpec((C, 1), lambda b, q: (0, 0)),
        ],
        out_specs=tuple(out_specs),
        scratch_shapes=[
            pltpu.VMEM((C8p, N), cd),   # hoisted proj_q (scale folded in)
            pltpu.VMEM((C8p, N), cd),   # hoisted proj_k
            pltpu.VMEM((C, N), cd),     # hoisted proj_v
        ],
        compiler_params=pltpu.CompilerParams(
            dimension_semantics=("parallel", "arbitrary"),
            vmem_limit_bytes=vmem_limit,
        ),
    )(x_cm, v_cm, wq_p, bq_p, wk_p, bk_p, wv, bv)

    out = results[0].reshape(B, C, W, H)
    if return_attention:
        return out, results[1]
    return out


def self_attn_reference(x, v, params):
    """Pure-JAX reference matching the PyTorch forward semantics (f32)."""
    B, C, W, H = x.shape
    _, Ck, _, _ = v.shape
    N = W * H
    C8 = params["wq"].shape[0]

    x_cn = x.reshape(B, C, N)
    v_cn = v.reshape(B, Ck, N)

    proj_q = jnp.einsum("oc,bcn->bon", params["wq"], x_cn) + params["bq"][None, :, None]
    proj_k = jnp.einsum("oc,bcn->bon", params["wk"], v_cn) + params["bk"][None, :, None]
    proj_v = jnp.einsum("oc,bcn->bon", params["wv"], x_cn) + params["bv"][None, :, None]

    energy = jnp.einsum("bci,bcj->bij", proj_q, proj_k) / math.sqrt(C8)
    attention = jax.nn.softmax(energy, axis=-1)
    out = jnp.einsum("bcj,bij->bci", proj_v, attention)
    return out.reshape(B, C, W, H), attention


def init_params(key, in_dim, key_in_dim):
    """Deterministic synthetic init matching Conv2d(kernel_size=1) defaults."""
    c8 = in_dim // 8
    k1, k2, k3, k4, k5, k6 = jax.random.split(key, 6)

    def _w(k, fan_out, fan_in):
        bound = 1.0 / math.sqrt(fan_in)
        return jax.random.uniform(k, (fan_out, fan_in), jnp.float32, -bound, bound)

    def _b(k, fan_out, fan_in):
        bound = 1.0 / math.sqrt(fan_in)
        return jax.random.uniform(k, (fan_out,), jnp.float32, -bound, bound)

    return {
        "wq": _w(k1, c8, in_dim), "bq": _b(k2, c8, in_dim),
        "wk": _w(k3, c8, key_in_dim), "bk": _b(k4, c8, key_in_dim),
        "wv": _w(k5, in_dim, in_dim), "bv": _b(k6, in_dim, in_dim),
    }


if __name__ == "__main__":
    in_dim = 32          # C  (C // 8 = 4 -> padded to 8 (f32) / 16 (bf16))
    key_in_dim = 16      # Ck
    B, W, H = 2, 16, 16  # N = 256

    key = jax.random.PRNGKey(0)
    kx, kv, kp = jax.random.split(key, 3)
    x = jax.random.normal(kx, (B, in_dim, W, H), jnp.float32)
    v = jax.random.normal(kv, (B, key_in_dim, W, H), jnp.float32)
    params = init_params(kp, in_dim, key_in_dim)

    out_ref, attn_ref = jax.block_until_ready(self_attn_reference(x, v, params))

    # f32 MXU-input path, explicit TQ=128 (exercises multi-tile q + per-batch hoist).
    out, attn = jax.block_until_ready(
        self_attn_pallas(x, v, params, block_q=128, compute_dtype=jnp.float32))
    assert out.shape == (B, in_dim, W, H)
    assert attn.shape == (B, W * H, W * H)
    assert jnp.allclose(out, out_ref, atol=2e-3, rtol=2e-3)
    assert jnp.allclose(attn, attn_ref, atol=2e-3, rtol=2e-3)

    # Default path: bf16 MXU inputs + bf16 attention writeback, auto tile size.
    out_bf, attn_bf = jax.block_until_ready(self_attn_pallas(x, v, params))
    assert jnp.allclose(out_bf, out_ref, atol=5e-2, rtol=5e-2)
    assert jnp.allclose(attn_bf.astype(jnp.float32), attn_ref, atol=1e-2, rtol=5e-2)

    # Attention-map-free path (skips the dominant (B, N, N) HBM writeback).
    out_na = jax.block_until_ready(
        self_attn_pallas(x, v, params, return_attention=False))
    assert out_na.shape == (B, in_dim, W, H)
    assert jnp.allclose(out_na, out_ref, atol=5e-2, rtol=5e-2)

    print("KERNEL_OK")
</pallas_src>

<mosaic_0001>
module attributes {stable_mosaic.version = 11 : i64} {
  func.func @kernel(%arg0: i32, %arg1: i32, %arg2: memref<1x32x256xf32, #tpu.memory_space<vmem>>, %arg3: memref<1x16x256xf32, #tpu.memory_space<vmem>>, %arg4: memref<8x32xf32, #tpu.memory_space<vmem>>, %arg5: memref<8x1xf32, #tpu.memory_space<vmem>>, %arg6: memref<8x16xf32, #tpu.memory_space<vmem>>, %arg7: memref<8x1xf32, #tpu.memory_space<vmem>>, %arg8: memref<32x32xf32, #tpu.memory_space<vmem>>, %arg9: memref<32x1xf32, #tpu.memory_space<vmem>>, %arg10: memref<1x32x128xf32, #tpu.memory_space<vmem>>, %arg11: memref<1x128x256xf32, #tpu.memory_space<vmem>>, %arg12: memref<8x256xf32, #tpu.memory_space<vmem>>, %arg13: memref<8x256xf32, #tpu.memory_space<vmem>>, %arg14: memref<32x256xf32, #tpu.memory_space<vmem>>) attributes {dimension_semantics = [#tpu.dimension_semantics<parallel>, #tpu.dimension_semantics<arbitrary>], iteration_bounds = array<i64: 2, 2>, scalar_prefetch = 0 : i64, scratch_operands = 3 : i64, tpu.core_type = #tpu.core_type<tc>, window_params = [{transform_indices = @transform_0, window_bounds = array<i64: 1, 32, 256>}, {transform_indices = @transform_1, window_bounds = array<i64: 1, 16, 256>}, {pipeline_mode = #tpu.pipeline_mode<synchronous>, transform_indices = @transform_2, window_bounds = array<i64: 8, 32>}, {pipeline_mode = #tpu.pipeline_mode<synchronous>, transform_indices = @transform_3, window_bounds = array<i64: 8, 1>}, {pipeline_mode = #tpu.pipeline_mode<synchronous>, transform_indices = @transform_4, window_bounds = array<i64: 8, 16>}, {pipeline_mode = #tpu.pipeline_mode<synchronous>, transform_indices = @transform_5, window_bounds = array<i64: 8, 1>}, {pipeline_mode = #tpu.pipeline_mode<synchronous>, transform_indices = @transform_6, window_bounds = array<i64: 32, 32>}, {pipeline_mode = #tpu.pipeline_mode<synchronous>, transform_indices = @transform_7, window_bounds = array<i64: 32, 1>}, {transform_indices = @transform_8, window_bounds = array<i64: 1, 32, 128>}, {transform_indices = @transform_9, window_bounds = array<i64: 1, 128, 256>}]} {
    %c0_i32 = arith.constant 0 : i32
    %0 = arith.cmpi eq, %arg1, %c0_i32 : i32
    %1 = arith.extui %0 : i1 to i32
    %c0_i32_0 = arith.constant 0 : i32
    %2 = arith.cmpi ne, %1, %c0_i32_0 : i32
    scf.if %2 {
      %c0_14 = arith.constant 0 : index
      %c0_15 = arith.constant 0 : index
      %c0_16 = arith.constant 0 : index
      %27 = vector.load %arg2[%c0_14, %c0_15, %c0_16] : memref<1x32x256xf32, #tpu.memory_space<vmem>>, vector<1x32x256xf32>
      %28 = vector.shape_cast %27 : vector<1x32x256xf32> to vector<32x256xf32>
      %c0_17 = arith.constant 0 : index
      %c0_18 = arith.constant 0 : index
      %c0_19 = arith.constant 0 : index
      %29 = vector.load %arg3[%c0_17, %c0_18, %c0_19] : memref<1x16x256xf32, #tpu.memory_space<vmem>>, vector<1x16x256xf32>
      %30 = vector.shape_cast %29 : vector<1x16x256xf32> to vector<16x256xf32>
      %c0_20 = arith.constant 0 : index
      %c0_21 = arith.constant 0 : index
      %31 = vector.load %arg4[%c0_20, %c0_21] : memref<8x32xf32, #tpu.memory_space<vmem>>, vector<8x32xf32>
      %cst_22 = arith.constant dense<0.000000e+00> : vector<8x256xf32>
      %32 = tpu.matmul %31, %28, %cst_22 {dimension_numbers = #tpu.dot_dimension_numbers<[1], [0], [0], [1], [0, 0, 1, 1], [], []>} : vector<8x32xf32>, vector<32x256xf32>, vector<8x256xf32> -> vector<8x256xf32>
      %c0_23 = arith.constant 0 : index
      %c0_24 = arith.constant 0 : index
      %33 = vector.load %arg5[%c0_23, %c0_24] : memref<8x1xf32, #tpu.memory_space<vmem>>, vector<8x1xf32>
      %34 = vector.broadcast %33 : vector<8x1xf32> to vector<8x256xf32>
      %35 = arith.addf %32, %34 : vector<8x256xf32>
      %c0_25 = arith.constant 0 : index
      %c0_26 = arith.constant 0 : index
      %36 = vector.load %arg12[%c0_25, %c0_26] : memref<8x256xf32, #tpu.memory_space<vmem>>, vector<8x256xf32>
      tpu.vector_store %arg12[%c0_25, %c0_26], %35 {strides = array<i32>} : memref<8x256xf32, #tpu.memory_space<vmem>>, vector<8x256xf32>,
      %c0_27 = arith.constant 0 : index
      %c0_28 = arith.constant 0 : index
      %37 = vector.load %arg6[%c0_27, %c0_28] : memref<8x16xf32, #tpu.memory_space<vmem>>, vector<8x16xf32>
      %cst_29 = arith.constant dense<0.000000e+00> : vector<8x256xf32>
      %38 = tpu.matmul %37, %30, %cst_29 {dimension_numbers = #tpu.dot_dimension_numbers<[1], [0], [0], [1], [0, 0, 1, 1], [], []>} : vector<8x16xf32>, vector<16x256xf32>, vector<8x256xf32> -> vector<8x256xf32>
      %c0_30 = arith.constant 0 : index
      %c0_31 = arith.constant 0 : index
      %39 = vector.load %arg7[%c0_30, %c0_31] : memref<8x1xf32, #tpu.memory_space<vmem>>, vector<8x1xf32>
      %40 = vector.broadcast %39 : vector<8x1xf32> to vector<8x256xf32>
      %41 = arith.addf %38, %40 : vector<8x256xf32>
      %c0_32 = arith.constant 0 : index
      %c0_33 = arith.constant 0 : index
      %42 = vector.load %arg13[%c0_32, %c0_33] : memref<8x256xf32, #tpu.memory_space<vmem>>, vector<8x256xf32>
      tpu.vector_store %arg13[%c0_32, %c0_33], %41 {strides = array<i32>} : memref<8x256xf32, #tpu.memory_space<vmem>>, vector<8x256xf32>,
      %c0_34 = arith.constant 0 : index
      %c0_35 = arith.constant 0 : index
      %43 = vector.load %arg8[%c0_34, %c0_35] : memref<32x32xf32, #tpu.memory_space<vmem>>, vector<32x32xf32>
      %cst_36 = arith.constant dense<0.000000e+00> : vector<32x256xf32>
      %44 = tpu.matmul %43, %28, %cst_36 {dimension_numbers = #tpu.dot_dimension_numbers<[1], [0], [0], [1], [0, 0, 1, 1], [], []>} : vector<32x32xf32>, vector<32x256xf32>, vector<32x256xf32> -> vector<32x256xf32>
      %c0_37 = arith.constant 0 : index
      %c0_38 = arith.constant 0 : index
      %45 = vector.load %arg9[%c0_37, %c0_38] : memref<32x1xf32, #tpu.memory_space<vmem>>, vector<32x1xf32>
      %46 = vector.broadcast %45 : vector<32x1xf32> to vector<32x256xf32>
      %47 = arith.addf %44, %46 : vector<32x256xf32>
      %c0_39 = arith.constant 0 : index
      %c0_40 = arith.constant 0 : index
      %48 = vector.load %arg14[%c0_39, %c0_40] : memref<32x256xf32, #tpu.memory_space<vmem>>, vector<32x256xf32>
      tpu.vector_store %arg14[%c0_39, %c0_40], %47 {strides = array<i32>} : memref<32x256xf32, #tpu.memory_space<vmem>>, vector<32x256xf32>,
    } else {
    }
    %c128_i32 = arith.constant 128 : i32
    %3 = arith.muli %arg1, %c128_i32 : i32
    %4 = tpu.assume_multiple %3, 128 : i32
    %c0 = arith.constant 0 : index
    %5 = arith.index_cast %4 : i32 to index
    %6 = vector.load %arg12[%c0, %5] : memref<8x256xf32, #tpu.memory_space<vmem>>, vector<8x128xf32>
    %c0_1 = arith.constant 0 : index
    %c0_2 = arith.constant 0 : index
    %7 = vector.load %arg13[%c0_1, %c0_2] : memref<8x256xf32, #tpu.memory_space<vmem>>, vector<8x256xf32>
    %cst = arith.constant dense<0.000000e+00> : vector<128x256xf32>
    %8 = tpu.matmul %6, %7, %cst {dimension_numbers = #tpu.dot_dimension_numbers<[0], [0], [1], [1], [0, 1, 1, 1], [], []>} : vector<8x128xf32>, vector<8x256xf32>, vector<128x256xf32> -> vector<128x256xf32>
    %cst_3 = arith.constant dense<0xFF800000> : vector<128xf32>
    %9 = vector.multi_reduction <maximumf>, %8, %cst_3 [1] : vector<128x256xf32> to vector<128xf32>
    %10 = vector.shape_cast %9 : vector<128xf32> to vector<128x1xf32>
    %11 = vector.broadcast %10 : vector<128x1xf32> to vector<128x256xf32>
    %12 = arith.subf %8, %11 : vector<128x256xf32>
    %13 = math.exp %12 : vector<128x256xf32>
    %cst_4 = arith.constant dense<0.000000e+00> : vector<128xf32>
    %14 = vector.multi_reduction <add>, %13, %cst_4 [1] : vector<128x256xf32> to vector<128xf32>
    %15 = vector.shape_cast %14 : vector<128xf32> to vector<128x1xf32>
    %16 = tpu.reciprocal %15 {approx = true} : vector<128x1xf32> -> vector<128x1xf32>
    %17 = vector.broadcast %16 : vector<128x1xf32> to vector<128x256xf32>
    %18 = arith.mulf %13, %17 : vector<128x256xf32>
    %c0_5 = arith.constant 0 : index
    %c0_6 = arith.constant 0 : index
    %19 = vector.load %arg14[%c0_5, %c0_6] : memref<32x256xf32, #tpu.memory_space<vmem>>, vector<32x256xf32>
    %cst_7 = arith.constant dense<0.000000e+00> : vector<32x128xf32>
    %20 = tpu.matmul %19, %18, %cst_7 {dimension_numbers = #tpu.dot_dimension_numbers<[1], [1], [0], [0], [0, 0, 1, 0], [], []>} : vector<32x256xf32>, vector<128x256xf32>, vector<32x128xf32> -> vector<32x128xf32>
    %c0_8 = arith.constant 0 : index
    %c0_9 = arith.constant 0 : index
    %c0_10 = arith.constant 0 : index
    %21 = vector.load %arg10[%c0_8, %c0_9, %c0_10] : memref<1x32x128xf32, #tpu.memory_space<vmem>>, vector<1x32x128xf32>
    %22 = vector.shape_cast %21 : vector<1x32x128xf32> to vector<32x128xf32>
    %23 = vector.shape_cast %20 : vector<32x128xf32> to vector<1x32x128xf32>
    tpu.vector_store %arg10[%c0_8, %c0_9, %c0_10], %23 {strides = array<i32>} : memref<1x32x128xf32, #tpu.memory_space<vmem>>, vector<1x32x128xf32>,
    %c0_11 = arith.constant 0 : index
    %c0_12 = arith.constant 0 : index
    %c0_13 = arith.constant 0 : index
    %24 = vector.load %arg11[%c0_11, %c0_12, %c0_13] : memref<1x128x256xf32, #tpu.memory_space<vmem>>, vector<1x128x256xf32>
    %25 = vector.shape_cast %24 : vector<1x128x256xf32> to vector<128x256xf32>
    %26 = vector.shape_cast %18 : vector<128x256xf32> to vector<1x128x256xf32>
    tpu.vector_store %arg11[%c0_11, %c0_12, %c0_13], %26 {strides = array<i32>} : memref<1x128x256xf32, #tpu.memory_space<vmem>>, vector<1x128x256xf32>,
    return
  }
  func.func @transform_0(%arg0: i32, %arg1: i32) -> (i32, i32, i32) {
    %c0_i32 = arith.constant 0 : i32
    %c0_i32_0 = arith.constant 0 : i32
    %c0_i32_1 = arith.constant 0 : i32
    return %arg0, %c0_i32, %c0_i32_0 : i32, i32, i32
  }
  func.func @transform_1(%arg0: i32, %arg1: i32) -> (i32, i32, i32) {
    %c0_i32 = arith.constant 0 : i32
    %c0_i32_0 = arith.constant 0 : i32
    %c0_i32_1 = arith.constant 0 : i32
    return %arg0, %c0_i32, %c0_i32_0 : i32, i32, i32
  }
  func.func @transform_2(%arg0: i32, %arg1: i32) -> (i32, i32) {
    %c0_i32 = arith.constant 0 : i32
    %c0_i32_0 = arith.constant 0 : i32
    %c0_i32_1 = arith.constant 0 : i32
    return %c0_i32, %c0_i32_0 : i32, i32
  }
  func.func @transform_3(%arg0: i32, %arg1: i32) -> (i32, i32) {
    %c0_i32 = arith.constant 0 : i32
    %c0_i32_0 = arith.constant 0 : i32
    %c0_i32_1 = arith.constant 0 : i32
    return %c0_i32, %c0_i32_0 : i32, i32
  }
  func.func @transform_4(%arg0: i32, %arg1: i32) -> (i32, i32) {
    %c0_i32 = arith.constant 0 : i32
    %c0_i32_0 = arith.constant 0 : i32
    %c0_i32_1 = arith.constant 0 : i32
    return %c0_i32, %c0_i32_0 : i32, i32
  }
  func.func @transform_5(%arg0: i32, %arg1: i32) -> (i32, i32) {
    %c0_i32 = arith.constant 0 : i32
    %c0_i32_0 = arith.constant 0 : i32
    %c0_i32_1 = arith.constant 0 : i32
    return %c0_i32, %c0_i32_0 : i32, i32
  }
  func.func @transform_6(%arg0: i32, %arg1: i32) -> (i32, i32) {
    %c0_i32 = arith.constant 0 : i32
    %c0_i32_0 = arith.constant 0 : i32
    %c0_i32_1 = arith.constant 0 : i32
    return %c0_i32, %c0_i32_0 : i32, i32
  }
  func.func @transform_7(%arg0: i32, %arg1: i32) -> (i32, i32) {
    %c0_i32 = arith.constant 0 : i32
    %c0_i32_0 = arith.constant 0 : i32
    %c0_i32_1 = arith.constant 0 : i32
    return %c0_i32, %c0_i32_0 : i32, i32
  }
  func.func @transform_8(%arg0: i32, %arg1: i32) -> (i32, i32, i32) {
    %c0_i32 = arith.constant 0 : i32
    %c0_i32_0 = arith.constant 0 : i32
    return %arg0, %c0_i32, %arg1 : i32, i32, i32
  }
  func.func @transform_9(%arg0: i32, %arg1: i32) -> (i32, i32, i32) {
    %c0_i32 = arith.constant 0 : i32
    %c0_i32_0 = arith.constant 0 : i32
    return %arg0, %arg1, %c0_i32 : i32, i32, i32
  }
}

</mosaic_0001>

<llo_original>
// kernel: tpu_custom_call.1
$region0: #{tpu_custom_call.1}
  #allocation0 [shape = 'u32[]', space=smem, size = 0x4, offset = 0x4, fixed_abs, tag = 'smem constant byte address 0x4 - core index']
  #allocation1 [shape = 'u32[144,128]{1,0:T(1,128)}', space=vmem, size = 0x12000, scoped, tag = 'internal scratch']
  #allocation2 [shape = 'f32[8,256]{1,0:T(8,128)}', space=vmem, size = 0x2000, scoped, tag = 'scratch operand']
  #allocation3 [shape = 'f32[8,256]{1,0:T(8,128)}', space=vmem, size = 0x2000, scoped, tag = 'scratch operand']
  #allocation4 [shape = 'f32[32,256]{1,0:T(8,128)}', space=vmem, size = 0x8000, scoped, tag = 'scratch operand']
  %s0 = inlined_call_operand.hbm [shape: f32[2,32,256], index: 0, kind: input, shape index: {}]
  %s1 = inlined_call_operand.hbm [shape: f32[2,16,256], index: 1, kind: input, shape index: {}]
  %s2 = inlined_call_operand.vmem [shape: f32[8,32], index: 2, kind: input, shape index: {}]
  %s3 = inlined_call_operand.vmem [shape: f32[8,1], index: 3, kind: input, shape index: {}]
  %s4 = inlined_call_operand.vmem [shape: f32[8,16], index: 4, kind: input, shape index: {}]
  %s5 = inlined_call_operand.vmem [shape: f32[8,1], index: 5, kind: input, shape index: {}]
  %s6 = inlined_call_operand.vmem [shape: f32[32,32], index: 6, kind: input, shape index: {}]
  %s7 = inlined_call_operand.vmem [shape: f32[32,1], index: 7, kind: input, shape index: {}]
  %s8 = inlined_call_operand.hbm [shape: f32[2,32,256], index: 8, kind: output, shape index: {0}]
  %s9 = inlined_call_operand.hbm [shape: f32[2,256,256], index: 9, kind: output, shape index: {1}]
  %10 = xla_tuple %s8, %s9
  %s11 = sld [smem:[#allocation0]]
  $region85: #{tpu_custom_call.1} parent=0
    _
  %s13 = ssub.s32 1, %s11
  %s14 = scalar_select 0, %s13, %s11
  $region1: #{tpu_custom_call.1} parent=0
    #allocation5 [shape = 'u8[65536]{0}', space=vmem, size = 0x10000, scoped, tag = 'input window, operand 0']
    #allocation6 [shape = 's32[2]{0}', space=sflag, size = 0x8, scoped, tag = 'scoped memory for tpu_custom_call.1']
    #allocation7 [shape = 's32[2]{0}', space=sflag, size = 0x8, scoped, tag = 'scoped memory for tpu_custom_call.1']
    #allocation8 [shape = 'u8[32768]{0}', space=vmem, size = 0x8000, scoped, tag = 'input window, operand 1']
    #allocation9 [shape = 's32[2]{0}', space=sflag, size = 0x8, scoped, tag = 'scoped memory for tpu_custom_call.1']
    #allocation10 [shape = 'u8[32768]{0}', space=vmem, size = 0x8000, scoped, tag = 'output window, operand 0']
    #allocation11 [shape = 'u8[262144]{0}', space=vmem, size = 0x40000, scoped, tag = 'output window, operand 1']
    #allocation12 [shape = 's32[2]{0}', space=sflag, size = 0x8, scoped, tag = 'scoped memory for tpu_custom_call.1']
    %15 = vsyncpa [#allocation6], 0
    %s16 = scalar_lea.sflag [#allocation6], 1
    %17 = vsyncpa %s16, 0
    %18 = vsyncpa [#allocation9], 0
    %s19 = scalar_lea.sflag [#allocation9], 1
    %20 = vsyncpa %s19, 0
    %21 = vsyncpa [#allocation7], 0
    %s22 = scalar_lea.sflag [#allocation7], 1
    %23 = vsyncpa %s22, 0
    %24 = vsyncpa [#allocation12], 0
    %s25 = scalar_lea.sflag [#allocation12], 1
    %26 = vsyncpa %s25, 0
    loop: start=0, step=1, limit=6
    $region2: #{tpu_custom_call.1} parent=1 // loop_pre_header
      _
    $region3: #{tpu_custom_call.1} parent=1 // loop_header
      %s28 = sphi 0, %s32
      %p29 = scmp.ge.s32.totalorder %s28, 6
      %s35 = sphi 0, %s47
      %s36 = sphi 0, %s43
      %s37 = sphi 0, %s35
      %s38 = sphi 0, %s36
      %s39 = sphi 0, %s37
      %s40 = sphi 0, %s38
      %s50 = sphi 0, %s52
      %s53 = sphi 0, %s50
      %s54 = sphi 0, %s53
      %s70 = sphi 0, %s54
      %s76 = sphi 0, %s78
      %s79 = sphi 0, %s76
      %s80 = sphi 0, %s79
      %s96 = sphi 0, %s80
      %s100 = sphi 0, %s100
      %s102 = sphi 0, %s100
      %s103 = sphi 0, %s102
      %s117 = sphi 0, %s103
      %s121 = sphi 0, %s121
      %s123 = sphi 0, %s121
      %s124 = sphi 0, %s123
      %s138 = sphi 0, %s124
      %s142 = sphi 0, %s142
      %s144 = sphi 0, %s142
      %s145 = sphi 0, %s144
      %s159 = sphi 0, %s145
      %s163 = sphi 0, %s163
      %s165 = sphi 0, %s163
      %s166 = sphi 0, %s165
      %s180 = sphi 0, %s166
      %s184 = sphi 0, %s184
      %s186 = sphi 0, %s184
      %s187 = sphi 0, %s186
      %s201 = sphi 0, %s187
      %s205 = sphi 0, %s205
      %s207 = sphi 0, %s205
      %s208 = sphi 0, %s207
      %s222 = sphi 0, %s208
      %s230 = sphi 0, %s232
      %s233 = sphi 0, %s230
      %s234 = sphi 0, %s233
      %s250 = sphi 0, %s234
      %s258 = sphi 0, %s260
      %s261 = sphi 0, %s258
      %s262 = sphi 0, %s261
      %s278 = sphi 0, %s262
    $region4: #{tpu_custom_call.1} parent=1 // loop_header_branch
      %31 = sbr.rel (%p29) target = $region8
    $region5: #{tpu_custom_call.1} parent=1 // loop_body
      %s33 = ssub.s32 %s28, 1
      %s34 = ssub.s32 %s28, 2
      %s41 = sadd.s32 1, %s36
      %p42 = scmp.ge.s32.totalorder %s41, 2
      %s43 = scalar_select %p42, 0, %s41
      %s44 = sadd.s32 1, %s35
      %s45 = scalar_select %p42, %s44, %s35
      %p46 = scmp.ge.s32.totalorder %s45, 2
      %s47 = scalar_select %p46, 0, %s45
      %s48 = ssub.s32 %s35, %s47
      %p49 = scmp.eq.s32.totalorder %s48, 0
      %s51 = sadd.s32 %s50, 1
      %s52 = scalar_select %p49, %s50, %s51
      %p55 = pneg %p49
      %p56 = scmp.eq.s32.totalorder %s28, 3
      %p57 = por %p55, %p56
      %p58 = scmp.ne.s32.totalorder %s50, %s53
      %p59 = scmp.eq.s32.totalorder %s28, 0
      %p60 = por %p58, %p59
      %p61 = scmp.ne.s32.totalorder %s50, %s53
      %p62 = scmp.eq.s32.totalorder %s33, 3
      %p63 = por %p61, %p62
      %p64 = scmp.ne.s32.totalorder %s53, %s54
      %p65 = scmp.eq.s32.totalorder %s33, 0
      %p66 = por %p64, %p65
      %p67 = scmp.ne.s32.totalorder %s53, %s54
      %p68 = scmp.eq.s32.totalorder %s34, 3
      %p69 = por %p67, %p68
      %p71 = scmp.ne.s32.totalorder %s54, %s70
      %p72 = scmp.eq.s32.totalorder %s34, 0
      %p73 = por %p71, %p72
      %s74 = ssub.s32 %s35, %s47
      %p75 = scmp.eq.s32.totalorder %s74, 0
      %s77 = sadd.s32 %s76, 1
      %s78 = scalar_select %p75, %s76, %s77
      %p81 = pneg %p75
      %p82 = scmp.eq.s32.totalorder %s28, 3
      %p83 = por %p81, %p82
      %p84 = scmp.ne.s32.totalorder %s76, %s79
      %p85 = scmp.eq.s32.totalorder %s28, 0
      %p86 = por %p84, %p85
      %p87 = scmp.ne.s32.totalorder %s76, %s79
      %p88 = scmp.eq.s32.totalorder %s33, 3
      %p89 = por %p87, %p88
      %p90 = scmp.ne.s32.totalorder %s79, %s80
      %p91 = scmp.eq.s32.totalorder %s33, 0
      %p92 = por %p90, %p91
      %p93 = scmp.ne.s32.totalorder %s79, %s80
      %p94 = scmp.eq.s32.totalorder %s34, 3
      %p95 = por %p93, %p94
      %p97 = scmp.ne.s32.totalorder %s80, %s96
      %p98 = scmp.eq.s32.totalorder %s34, 0
      %p99 = por %p97, %p98
      %s101 = sadd.s32 %s100, 1
      %p104 = scmp.eq.s32.totalorder %s28, 3
      %p105 = scmp.ne.s32.totalorder %s100, %s102
      %p106 = scmp.eq.s32.totalorder %s28, 0
      %p107 = por %p105, %p106
      %p108 = scmp.ne.s32.totalorder %s100, %s102
      %p109 = scmp.eq.s32.totalorder %s33, 3
      %p110 = por %p108, %p109
      %p111 = scmp.ne.s32.totalorder %s102, %s103
      %p112 = scmp.eq.s32.totalorder %s33, 0
      %p113 = por %p111, %p112
      %p114 = scmp.ne.s32.totalorder %s102, %s103
      %p115 = scmp.eq.s32.totalorder %s34, 3
      %p116 = por %p114, %p115
      %p118 = scmp.ne.s32.totalorder %s103, %s117
      %p119 = scmp.eq.s32.totalorder %s34, 0
      %p120 = por %p118, %p119
      %s122 = sadd.s32 %s121, 1
      %p125 = scmp.eq.s32.totalorder %s28, 3
      %p126 = scmp.ne.s32.totalorder %s121, %s123
      %p127 = scmp.eq.s32.totalorder %s28, 0
      %p128 = por %p126, %p127
      %p129 = scmp.ne.s32.totalorder %s121, %s123
      %p130 = scmp.eq.s32.totalorder %s33, 3
      %p131 = por %p129, %p130
      %p132 = scmp.ne.s32.totalorder %s123, %s124
      %p133 = scmp.eq.s32.totalorder %s33, 0
      %p134 = por %p132, %p133
      %p135 = scmp.ne.s32.totalorder %s123, %s124
      %p136 = scmp.eq.s32.totalorder %s34, 3
      %p137 = por %p135, %p136
      %p139 = scmp.ne.s32.totalorder %s124, %s138
      %p140 = scmp.eq.s32.totalorder %s34, 0
      %p141 = por %p139, %p140
      %s143 = sadd.s32 %s142, 1
      %p146 = scmp.eq.s32.totalorder %s28, 3
      %p147 = scmp.ne.s32.totalorder %s142, %s144
      %p148 = scmp.eq.s32.totalorder %s28, 0
      %p149 = por %p147, %p148
      %p150 = scmp.ne.s32.totalorder %s142, %s144
      %p151 = scmp.eq.s32.totalorder %s33, 3
      %p152 = por %p150, %p151
      %p153 = scmp.ne.s32.totalorder %s144, %s145
      %p154 = scmp.eq.s32.totalorder %s33, 0
      %p155 = por %p153, %p154
      %p156 = scmp.ne.s32.totalorder %s144, %s145
      %p157 = scmp.eq.s32.totalorder %s34, 3
      %p158 = por %p156, %p157
      %p160 = scmp.ne.s32.totalorder %s145, %s159
      %p161 = scmp.eq.s32.totalorder %s34, 0
      %p162 = por %p160, %p161
      %s164 = sadd.s32 %s163, 1
      %p167 = scmp.eq.s32.totalorder %s28, 3
      %p168 = scmp.ne.s32.totalorder %s163, %s165
      %p169 = scmp.eq.s32.totalorder %s28, 0
      %p170 = por %p168, %p169
      %p171 = scmp.ne.s32.totalorder %s163, %s165
      %p172 = scmp.eq.s32.totalorder %s33, 3
      %p173 = por %p171, %p172
      %p174 = scmp.ne.s32.totalorder %s165, %s166
      %p175 = scmp.eq.s32.totalorder %s33, 0
      %p176 = por %p174, %p175
      %p177 = scmp.ne.s32.totalorder %s165, %s166
      %p178 = scmp.eq.s32.totalorder %s34, 3
      %p179 = por %p177, %p178
      %p181 = scmp.ne.s32.totalorder %s166, %s180
      %p182 = scmp.eq.s32.totalorder %s34, 0
      %p183 = por %p181, %p182
      %s185 = sadd.s32 %s184, 1
      %p188 = scmp.eq.s32.totalorder %s28, 3
      %p189 = scmp.ne.s32.totalorder %s184, %s186
      %p190 = scmp.eq.s32.totalorder %s28, 0
      %p191 = por %p189, %p190
      %p192 = scmp.ne.s32.totalorder %s184, %s186
      %p193 = scmp.eq.s32.totalorder %s33, 3
      %p194 = por %p192, %p193
      %p195 = scmp.ne.s32.totalorder %s186, %s187
      %p196 = scmp.eq.s32.totalorder %s33, 0
      %p197 = por %p195, %p196
      %p198 = scmp.ne.s32.totalorder %s186, %s187
      %p199 = scmp.eq.s32.totalorder %s34, 3
      %p200 = por %p198, %p199
      %p202 = scmp.ne.s32.totalorder %s187, %s201
      %p203 = scmp.eq.s32.totalorder %s34, 0
      %p204 = por %p202, %p203
      %s206 = sadd.s32 %s205, 1
      %p209 = scmp.eq.s32.totalorder %s28, 3
      %p210 = scmp.ne.s32.totalorder %s205, %s207
      %p211 = scmp.eq.s32.totalorder %s28, 0
      %p212 = por %p210, %p211
      %p213 = scmp.ne.s32.totalorder %s205, %s207
      %p214 = scmp.eq.s32.totalorder %s33, 3
      %p215 = por %p213, %p214
      %p216 = scmp.ne.s32.totalorder %s207, %s208
      %p217 = scmp.eq.s32.totalorder %s33, 0
      %p218 = por %p216, %p217
      %p219 = scmp.ne.s32.totalorder %s207, %s208
      %p220 = scmp.eq.s32.totalorder %s34, 3
      %p221 = por %p219, %p220
      %p223 = scmp.ne.s32.totalorder %s208, %s222
      %p224 = scmp.eq.s32.totalorder %s34, 0
      %p225 = por %p223, %p224
      %s226 = ssub.s32 %s35, %s47
      %s227 = ssub.s32 %s36, %s43
      %s228 = sor.u32 %s226, %s227
      %p229 = scmp.eq.s32.totalorder %s228, 0
      %s231 = sadd.s32 %s230, 1
      %s232 = scalar_select %p229, %s230, %s231
      %p235 = pneg %p229
      %p236 = scmp.eq.s32.totalorder %s28, 3
      %p237 = por %p235, %p236
      %p238 = scmp.ne.s32.totalorder %s230, %s233
      %p239 = scmp.eq.s32.totalorder %s28, 0
      %p240 = por %p238, %p239
      %p241 = scmp.ne.s32.totalorder %s230, %s233
      %p242 = scmp.eq.s32.totalorder %s33, 3
      %p243 = por %p241, %p242
      %p244 = scmp.ne.s32.totalorder %s233, %s234
      %p245 = scmp.eq.s32.totalorder %s33, 0
      %p246 = por %p244, %p245
      %p247 = scmp.ne.s32.totalorder %s233, %s234
      %p248 = scmp.eq.s32.totalorder %s34, 3
      %p249 = por %p247, %p248
      %p251 = scmp.ne.s32.totalorder %s234, %s250
      %p252 = scmp.eq.s32.totalorder %s34, 0
      %p253 = por %p251, %p252
      %s254 = ssub.s32 %s35, %s47
      %s255 = ssub.s32 %s36, %s43
      %s256 = sor.u32 %s254, %s255
      %p257 = scmp.eq.s32.totalorder %s256, 0
      %s259 = sadd.s32 %s258, 1
      %s260 = scalar_select %p257, %s258, %s259
      %p263 = pneg %p257
      %p264 = scmp.eq.s32.totalorder %s28, 3
      %p265 = por %p263, %p264
      %p266 = scmp.ne.s32.totalorder %s258, %s261
      %p267 = scmp.eq.s32.totalorder %s28, 0
      %p268 = por %p266, %p267
      %p269 = scmp.ne.s32.totalorder %s258, %s261
      %p270 = scmp.eq.s32.totalorder %s33, 3
      %p271 = por %p269, %p270
      %p272 = scmp.ne.s32.totalorder %s261, %s262
      %p273 = scmp.eq.s32.totalorder %s33, 0
      %p274 = por %p272, %p273
      %p275 = scmp.ne.s32.totalorder %s261, %s262
      %p276 = scmp.eq.s32.totalorder %s34, 3
      %p277 = por %p275, %p276
      %p279 = scmp.ne.s32.totalorder %s262, %s278
      %p280 = scmp.eq.s32.totalorder %s34, 0
      %p281 = por %p279, %p280
      %p282 = scmp.le.s32.totalorder 1, %s28
      %p283 = scmp.lt.s32.totalorder %s28, 5
      %p284 = pnand %p282, %p283
      %p285 = pneg %p284
      // Predicated region
      $region9: #{tpu_custom_call.1} parent=5 // pred_check
        _
      $region10: #{tpu_custom_call.1} parent=5 // pred_check_branch
        %287 = sbr.rel (%p284) target = $region12
      $region11: #{tpu_custom_call.1} parent=5 // pred_region
        %s288 = ssub.s32 %s28, 1
        // Predicated region
        $region13: #{tpu_custom_call.1} parent=11 // pred_check
          %p289 = pneg %p113
        $region14: #{tpu_custom_call.1} parent=11 // pred_check_branch
          %291 = sbr.rel (%p289) target = $region16
        $region15: #{tpu_custom_call.1} parent=11 // pred_region
          _
        $region16: #{tpu_custom_call.1} parent=11 // pred_fallthru
          _
        // Predicated region
        $region17: #{tpu_custom_call.1} parent=11 // pred_check
          %p292 = pneg %p134
        $region18: #{tpu_custom_call.1} parent=11 // pred_check_branch
          %294 = sbr.rel (%p292) target = $region20
        $region19: #{tpu_custom_call.1} parent=11 // pred_region
          _
        $region20: #{tpu_custom_call.1} parent=11 // pred_fallthru
          _
        // Predicated region
        $region21: #{tpu_custom_call.1} parent=11 // pred_check
          %p295 = pneg %p155
        $region22: #{tpu_custom_call.1} parent=11 // pred_check_branch
          %297 = sbr.rel (%p295) target = $region24
        $region23: #{tpu_custom_call.1} parent=11 // pred_region
          _
        $region24: #{tpu_custom_call.1} parent=11 // pred_fallthru
          _
        // Predicated region
        $region25: #{tpu_custom_call.1} parent=11 // pred_check
          %p298 = pneg %p176
        $region26: #{tpu_custom_call.1} parent=11 // pred_check_branch
          %300 = sbr.rel (%p298) target = $region28
        $region27: #{tpu_custom_call.1} parent=11 // pred_region
          _
        $region28: #{tpu_custom_call.1} parent=11 // pred_fallthru
          _
        // Predicated region
        $region29: #{tpu_custom_call.1} parent=11 // pred_check
          %p301 = pneg %p197
        $region30: #{tpu_custom_call.1} parent=11 // pred_check_branch
          %303 = sbr.rel (%p301) target = $region32
        $region31: #{tpu_custom_call.1} parent=11 // pred_region
          _
        $region32: #{tpu_custom_call.1} parent=11 // pred_fallthru
          _
        // Predicated region
        $region33: #{tpu_custom_call.1} parent=11 // pred_check
          %p304 = pneg %p218
        $region34: #{tpu_custom_call.1} parent=11 // pred_check_branch
          %306 = sbr.rel (%p304) target = $region36
        $region35: #{tpu_custom_call.1} parent=11 // pred_region
          _
        $region36: #{tpu_custom_call.1} parent=11 // pred_fallthru
          _
      $region12: #{tpu_custom_call.1} parent=5 // pred_fallthru
        _
      %p307 = scmp.lt.s32.totalorder %s28, 4
      // Predicated region
      $region37: #{tpu_custom_call.1} parent=5 // pred_check
        %p308 = pneg %p307
      $region38: #{tpu_custom_call.1} parent=5 // pred_check_branch
        %310 = sbr.rel (%p308) target = $region40
      $region39: #{tpu_custom_call.1} parent=5 // pred_region
        // Predicated region
        $region41: #{tpu_custom_call.1} parent=39 // pred_check
          %p311 = pneg %p60
        $region42: #{tpu_custom_call.1} parent=39 // pred_check_branch
          %313 = sbr.rel (%p311) target = $region44
        $region43: #{tpu_custom_call.1} parent=39 // pred_region
          %s314 = sand.u32 %s50, 1
          %s315 = scalar_lea.sflag [#allocation6], %s314
          %s316 = sand.u32 %s50, 1
          %s317 = smul.addr %s316, 64
          %s318 = scalar_lea.vmem [#allocation5], %s317
          %s320 = ssub.s32 1024, 1024
          %321 = vsyncadd %s315, %s320
          %s322 = smul.addr %s35, 8
          %s323 = smul.addr %s322, 128
          %s324 = scalar_lea.hbm %s0, %s323
          %s325 = sshll.u32 %s318, 4
          %s326 = int_to_ptr.vmem [resolvable:$true] %s325
          %331 = dma.hbm_to_vmem [thread:$0]  %s324, 1024, %s326, %s315, 256, 256, 16
        $region44: #{tpu_custom_call.1} parent=39 // pred_fallthru
          _
        // Predicated region
        $region45: #{tpu_custom_call.1} parent=39 // pred_check
          %p332 = pneg %p86
        $region46: #{tpu_custom_call.1} parent=39 // pred_check_branch
          %334 = sbr.rel (%p332) target = $region48
        $region47: #{tpu_custom_call.1} parent=39 // pred_region
          %s335 = sand.u32 %s76, 1
          %s336 = scalar_lea.sflag [#allocation9], %s335
          %s337 = sand.u32 %s76, 1
          %s338 = smul.addr %s337, 32
          %s339 = scalar_lea.vmem [#allocation8], %s338
          %s341 = ssub.s32 512, 512
          %342 = vsyncadd %s336, %s341
          %s343 = smul.addr %s35, 4
          %s344 = smul.addr %s343, 128
          %s345 = scalar_lea.hbm %s1, %s344
          %s346 = sshll.u32 %s339, 4
          %s347 = int_to_ptr.vmem [resolvable:$true] %s346
          %352 = dma.hbm_to_vmem [thread:$0]  %s345, 512, %s347, %s336, 256, 256, 16
        $region48: #{tpu_custom_call.1} parent=39 // pred_fallthru
          _
      $region40: #{tpu_custom_call.1} parent=5 // pred_fallthru
        _
      %p353 = scmp.le.s32.totalorder 1, %s28
      %p354 = scmp.lt.s32.totalorder %s28, 5
      %p355 = pnand %p353, %p354
      %p356 = pneg %p355
      // Predicated region
      $region49: #{tpu_custom_call.1} parent=5 // pred_check
        _
      $region50: #{tpu_custom_call.1} parent=5 // pred_check_branch
        %358 = sbr.rel (%p355) target = $region52
      $region51: #{tpu_custom_call.1} parent=5 // pred_region
        %s359 = ssub.s32 %s28, 1
        %s360 = sand.u32 %s53, 1
        %s361 = scalar_lea.sflag [#allocation6], %s360
        %s362 = sand.u32 %s53, 1
        %s363 = smul.addr %s362, 64
        %s364 = scalar_lea.vmem [#allocation5], %s363
        // Predicated region
        $region53: #{tpu_custom_call.1} parent=51 // pred_check
          %p365 = pneg %p66
        $region54: #{tpu_custom_call.1} parent=51 // pred_check_branch
          %367 = sbr.rel (%p365) target = $region56
        $region55: #{tpu_custom_call.1} parent=51 // pred_region
          %368 = dma.done %s361, 1024
        $region56: #{tpu_custom_call.1} parent=51 // pred_fallthru
          _
        %s369 = sand.u32 %s79, 1
        %s370 = scalar_lea.sflag [#allocation9], %s369
        %s371 = sand.u32 %s79, 1
        %s372 = smul.addr %s371, 32
        %s373 = scalar_lea.vmem [#allocation8], %s372
        // Predicated region
        $region57: #{tpu_custom_call.1} parent=51 // pred_check
          %p374 = pneg %p92
        $region58: #{tpu_custom_call.1} parent=51 // pred_check_branch
          %376 = sbr.rel (%p374) target = $region60
        $region59: #{tpu_custom_call.1} parent=51 // pred_region
          %377 = dma.done %s370, 512
        $region60: #{tpu_custom_call.1} parent=51 // pred_fallthru
          _
        %s378 = sand.u32 %s53, 1
        %s379 = scalar_lea.sflag [#allocation6], %s378
        %s380 = sand.u32 %s53, 1
        %s381 = smul.addr %s380, 64
        %s382 = scalar_lea.vmem [#allocation5], %s381
        %p383 = pneg %p66
        %p384 = pneg %p63
        %s385 = sand.u32 %s79, 1
        %s386 = scalar_lea.sflag [#allocation9], %s385
        %s387 = sand.u32 %s79, 1
        %s388 = smul.addr %s387, 32
        %s389 = scalar_lea.vmem [#allocation8], %s388
        %p390 = pneg %p92
        %p391 = pneg %p89
        %p392 = pneg %p113
        %p393 = pneg %p110
        %p394 = pneg %p134
        %p395 = pneg %p131
        %p396 = pneg %p155
        %p397 = pneg %p152
        %p398 = pneg %p176
        %p399 = pneg %p173
        %p400 = pneg %p197
        %p401 = pneg %p194
        %p402 = pneg %p218
        %p403 = pneg %p215
        %p404 = pneg %p246
        %p405 = pneg %p243
        %s406 = sand.u32 %s233, 1
        %s407 = scalar_lea.sflag [#allocation7], %s406
        %s408 = sand.u32 %s233, 1
        %s409 = smul.addr %s408, 32
        %s410 = scalar_lea.vmem [#allocation10], %s409
        %p411 = pneg %p274
        %p412 = pneg %p271
        %s413 = sand.u32 %s261, 1
        %s414 = scalar_lea.sflag [#allocation12], %s413
        %s415 = sand.u32 %s261, 1
        %s416 = smul.addr %s415, 256
        %s417 = scalar_lea.vmem [#allocation11], %s416
        %s418 = smul.u32 16, %s38
        %p419 = scmp.eq.s32.totalorder %s38, 0
        // Predicated region
        $region61: #{tpu_custom_call.1} parent=51 // pred_check
          %p420 = pneg %p419
        $region62: #{tpu_custom_call.1} parent=51 // pred_check_branch
          %422 = sbr.rel (%p420) target = $region64
        $region63: #{tpu_custom_call.1} parent=51 // pred_region
          %v423 = vld [vmem:[%s364] sm:$0xff]
          %v424 = vld [vmem:[%s364 + $0x8] sm:$0xff]
          %v425 = vld [vmem:[%s364 + $0x10] sm:$0xff]
          %v426 = vld [vmem:[%s364 + $0x18] sm:$0xff]
          %v427 = vld [vmem:[%s364 + $0x20] sm:$0xff]
          %v428 = vld [vmem:[%s364 + $0x28] sm:$0xff]
          %v429 = vld [vmem:[%s364 + $0x30] sm:$0xff]
          %v430 = vld [vmem:[%s364 + $0x38] sm:$0xff]
          %v431 = vld [vmem:[%s373] sm:$0xff]
          %v432 = vld [vmem:[%s373 + $0x8] sm:$0xff]
          %v433 = vld [vmem:[%s373 + $0x10] sm:$0xff]
          %v434 = vld [vmem:[%s373 + $0x18] sm:$0xff]
          %v435 = vld [vmem:[%s2] sm:$0xff]
          %v436 = vld [vmem:[%s3] sm:$0xff]
          %438 = vset.pattern.permute.xlu0 0
          %439 = vperm.xlu0 %438, %v436
          %v440 = vpop.permute.xlu0 %439
          %vm442 = vcmask 261120
          %v444 = vsel %vm442, %v435, 0
          %446 = vmatprep.subr.mxu0 %v424
          %447 = vmatpush1.msra.mxu0 %v423
          %448 = vmatprep.subr.mxu0 %v426
          %449 = vmatpush1.msra.mxu0 %v425
          %450 = vmatprep.subr.mxu0 %v428
          %451 = vmatpush1.msra.mxu0 %v427
          %452 = vmatprep.subr.mxu0 %v430
          %453 = vmatpush1.msra.mxu0 %v429
          %454 = vmatprep.subr.mxu0 0.0
          %455 = vmatpush1.msra.mxu0 0.0
          %456 = vmatprep.subr.mxu0 0.0
          %457 = vmatpush1.msra.mxu0 0.0
          %458 = vmatprep.subr.mxu0 0.0
          %459 = vmatpush1.msra.mxu0 0.0
          %460 = vmatprep.subr.mxu0 0.0
          %461 = vmatpush1.msra.mxu0 0.0
          %462 = vmatprep.subr.mxu0 0.0
          %463 = vmatpush1.msra.mxu0 0.0
          %464 = vmatprep.subr.mxu0 0.0
          %465 = vmatpush1.msra.mxu0 0.0
          %466 = vmatprep.subr.mxu0 0.0
          %467 = vmatpush1.msra.mxu0 0.0
          %468 = vmatprep.subr.mxu0 0.0
          %469 = vmatpush1.msra.mxu0 0.0
          %470 = vmatprep.subr.mxu0 0.0
          %471 = vmatpush1.msra.mxu0 0.0
          %472 = vmatprep.subr.mxu0 0.0
          %473 = vmatpush1.msra.mxu0 0.0
          %474 = vmatprep.subr.mxu0 0.0
          %475 = vmatpush1.msra.mxu0 0.0
          %476 = vmatprep.subr.mxu0 0.0
          %477 = vmatpush1.msra.mxu0 0.0
          %478 = vmatprep.subr.mxu0 0.0
          %479 = vmatpush1.msra.mxu0 0.0
          %480 = vmatprep.subr.mxu0 0.0
          %481 = vmatpush1.msra.mxu0 0.0
          %482 = vmatprep.subr.mxu0 0.0
          %483 = vmatpush1.msra.mxu0 0.0
          %484 = vmatprep.subr.mxu0 0.0
          %485 = vmatpush1.msra.mxu0 0.0
          %486 = vmatprep.subr.mxu0 0.0
          %487 = vmatpush1.msra.mxu0 0.0
          %488 = vmatprep.subr.mxu0 0.0
          %489 = vmatpush1.msra.mxu0 0.0
          %490 = vmatprep.subr.mxu0 0.0
          %491 = vmatpush1.msra.mxu0 0.0
          %492 = vmatprep.subr.mxu0 0.0
          %493 = vmatpush1.msra.mxu0 0.0
          %494 = vmatprep.subr.mxu0 0.0
          %495 = vmatpush1.msra.mxu0 0.0
          %496 = vmatprep.subr.mxu0 0.0
          %497 = vmatpush1.msra.mxu0 0.0
          %498 = vmatprep.subr.mxu0 0.0
          %499 = vmatpush1.msra.mxu0 0.0
          %500 = vmatprep.subr.mxu0 0.0
          %501 = vmatpush1.msra.mxu0 0.0
          %502 = vmatprep.subr.mxu0 0.0
          %503 = vmatpush1.msra.mxu0 0.0
          %504 = vmatprep.subr.mxu0 0.0
          %505 = vmatpush1.msra.mxu0 0.0
          %506 = vmatprep.subr.mxu0 0.0
          %507 = vmatpush1.msra.mxu0 0.0
          %508 = vmatprep.subr.mxu0 0.0
          %509 = vmatpush1.msra.mxu0 0.0
          %510 = vmatprep.mubr.f32.mxu0 0.0
          %511 = vmatmul.mubr.f32.gmra.mrb[0].mxu0 %v444
          %v512 = vpop.f32.mrb[0].mxu0
          %v513 = vadd.f32 %v440, %v512
          %v514 = vpop.f32.mrb[0].mxu0
          %v515 = vadd.f32 %v440, %v514
          %516 = vdwg.mxu0
          %517 = vst [vmem:[#allocation2] sm:$0xff] %v513
          %518 = vst [vmem:[#allocation2 + $0x8] sm:$0xff] %v515
          %v519 = vld [vmem:[%s4] sm:$0xff]
          %v520 = vld [vmem:[%s5] sm:$0xff]
          %522 = vset.pattern.permute.xlu0 0
          %523 = vperm.xlu0 %522, %v520
          %v524 = vpop.permute.xlu0 %523
          %vm526 = vcmask 130048
          %v528 = vsel %vm526, %v519, 0
          %530 = vmatprep.subr.mxu0 %v432
          %531 = vmatpush1.msra.mxu0 %v431
          %532 = vmatprep.subr.mxu0 %v434
          %533 = vmatpush1.msra.mxu0 %v433
          %534 = vmatprep.subr.mxu0 0.0
          %535 = vmatpush1.msra.mxu0 0.0
          %536 = vmatprep.subr.mxu0 0.0
          %537 = vmatpush1.msra.mxu0 0.0
          %538 = vmatprep.subr.mxu0 0.0
          %539 = vmatpush1.msra.mxu0 0.0
          %540 = vmatprep.subr.mxu0 0.0
          %541 = vmatpush1.msra.mxu0 0.0
          %542 = vmatprep.subr.mxu0 0.0
          %543 = vmatpush1.msra.mxu0 0.0
          %544 = vmatprep.subr.mxu0 0.0
          %545 = vmatpush1.msra.mxu0 0.0
          %546 = vmatprep.subr.mxu0 0.0
          %547 = vmatpush1.msra.mxu0 0.0
          %548 = vmatprep.subr.mxu0 0.0
          %549 = vmatpush1.msra.mxu0 0.0
          %550 = vmatprep.subr.mxu0 0.0
          %551 = vmatpush1.msra.mxu0 0.0
          %552 = vmatprep.subr.mxu0 0.0
          %553 = vmatpush1.msra.mxu0 0.0
          %554 = vmatprep.subr.mxu0 0.0
          %555 = vmatpush1.msra.mxu0 0.0
          %556 = vmatprep.subr.mxu0 0.0
          %557 = vmatpush1.msra.mxu0 0.0
          %558 = vmatprep.subr.mxu0 0.0
          %559 = vmatpush1.msra.mxu0 0.0
          %560 = vmatprep.subr.mxu0 0.0
          %561 = vmatpush1.msra.mxu0 0.0
          %562 = vmatprep.subr.mxu0 0.0
          %563 = vmatpush1.msra.mxu0 0.0
          %564 = vmatprep.subr.mxu0 0.0
          %565 = vmatpush1.msra.mxu0 0.0
          %566 = vmatprep.subr.mxu0 0.0
          %567 = vmatpush1.msra.mxu0 0.0
          %568 = vmatprep.subr.mxu0 0.0
          %569 = vmatpush1.msra.mxu0 0.0
          %570 = vmatprep.subr.mxu0 0.0
          %571 = vmatpush1.msra.mxu0 0.0
          %572 = vmatprep.subr.mxu0 0.0
          %573 = vmatpush1.msra.mxu0 0.0
          %574 = vmatprep.subr.mxu0 0.0
          %575 = vmatpush1.msra.mxu0 0.0
          %576 = vmatprep.subr.mxu0 0.0
          %577 = vmatpush1.msra.mxu0 0.0
          %578 = vmatprep.subr.mxu0 0.0
          %579 = vmatpush1.msra.mxu0 0.0
          %580 = vmatprep.subr.mxu0 0.0
          %581 = vmatpush1.msra.mxu0 0.0
          %582 = vmatprep.subr.mxu0 0.0
          %583 = vmatpush1.msra.mxu0 0.0
          %584 = vmatprep.subr.mxu0 0.0
          %585 = vmatpush1.msra.mxu0 0.0
          %586 = vmatprep.subr.mxu0 0.0
          %587 = vmatpush1.msra.mxu0 0.0
          %588 = vmatprep.subr.mxu0 0.0
          %589 = vmatpush1.msra.mxu0 0.0
          %590 = vmatprep.subr.mxu0 0.0
          %591 = vmatpush1.msra.mxu0 0.0
          %592 = vmatprep.subr.mxu0 0.0
          %593 = vmatpush1.msra.mxu0 0.0
          %594 = vmatprep.mubr.f32.mxu0 0.0
          %595 = vmatmul.mubr.f32.gmra.mrb[0].mxu0 %v528
          %v596 = vpop.f32.mrb[0].mxu0
          %v597 = vadd.f32 %v524, %v596
          %v598 = vpop.f32.mrb[0].mxu0
          %v599 = vadd.f32 %v524, %v598
          %600 = vdwg.mxu0
          %601 = vst [vmem:[#allocation3] sm:$0xff] %v597
          %602 = vst [vmem:[#allocation3 + $0x8] sm:$0xff] %v599
          %v603 = vld [vmem:[%s6] sm:$0xff]
          %v604 = vld [vmem:[%s6 + $0x8] sm:$0xff]
          %v605 = vld [vmem:[%s6 + $0x10] sm:$0xff]
          %v606 = vld [vmem:[%s6 + $0x18] sm:$0xff]
          %v607 = vld [vmem:[%s7] sm:$0xff]
          %v608 = vld [vmem:[%s7 + $0x8] sm:$0xff]
          %v609 = vld [vmem:[%s7 + $0x10] sm:$0xff]
          %v610 = vld [vmem:[%s7 + $0x18] sm:$0xff]
          %612 = vset.pattern.permute.xlu0 0
          %613 = vperm.xlu0 %612, %v607
          %v614 = vpop.permute.xlu0 %613
          %617 = vset.pattern.permute.xlu0 0
          %618 = vperm.xlu0 %617, %v608
          %v619 = vpop.permute.xlu0 %618
          %622 = vset.pattern.permute.xlu0 0
          %623 = vperm.xlu0 %622, %v609
          %v624 = vpop.permute.xlu0 %623
          %627 = vset.pattern.permute.xlu0 0
          %628 = vperm.xlu0 %627, %v610
          %v629 = vpop.permute.xlu0 %628
          %v632 = vsel %vm442, %v603, 0
          %v635 = vsel %vm442, %v604, 0
          %v638 = vsel %vm442, %v605, 0
          %v641 = vsel %vm442, %v606, 0
          %643 = vmatprep.subr.mxu0 %v424
          %644 = vmatpush1.msra.mxu0 %v423
          %645 = vmatprep.subr.mxu0 %v426
          %646 = vmatpush1.msra.mxu0 %v425
          %647 = vmatprep.subr.mxu0 %v428
          %648 = vmatpush1.msra.mxu0 %v427
          %649 = vmatprep.subr.mxu0 %v430
          %650 = vmatpush1.msra.mxu0 %v429
          %651 = vmatprep.subr.mxu0 0.0
          %652 = vmatpush1.msra.mxu0 0.0
          %653 = vmatprep.subr.mxu0 0.0
          %654 = vmatpush1.msra.mxu0 0.0
          %655 = vmatprep.subr.mxu0 0.0
          %656 = vmatpush1.msra.mxu0 0.0
          %657 = vmatprep.subr.mxu0 0.0
          %658 = vmatpush1.msra.mxu0 0.0
          %659 = vmatprep.subr.mxu0 0.0
          %660 = vmatpush1.msra.mxu0 0.0
          %661 = vmatprep.subr.mxu0 0.0
          %662 = vmatpush1.msra.mxu0 0.0
          %663 = vmatprep.subr.mxu0 0.0
          %664 = vmatpush1.msra.mxu0 0.0
          %665 = vmatprep.subr.mxu0 0.0
          %666 = vmatpush1.msra.mxu0 0.0
          %667 = vmatprep.subr.mxu0 0.0
          %668 = vmatpush1.msra.mxu0 0.0
          %669 = vmatprep.subr.mxu0 0.0
          %670 = vmatpush1.msra.mxu0 0.0
          %671 = vmatprep.subr.mxu0 0.0
          %672 = vmatpush1.msra.mxu0 0.0
          %673 = vmatprep.subr.mxu0 0.0
          %674 = vmatpush1.msra.mxu0 0.0
          %675 = vmatprep.subr.mxu0 0.0
          %676 = vmatpush1.msra.mxu0 0.0
          %677 = vmatprep.subr.mxu0 0.0
          %678 = vmatpush1.msra.mxu0 0.0
          %679 = vmatprep.subr.mxu0 0.0
          %680 = vmatpush1.msra.mxu0 0.0
          %681 = vmatprep.subr.mxu0 0.0
          %682 = vmatpush1.msra.mxu0 0.0
          %683 = vmatprep.subr.mxu0 0.0
          %684 = vmatpush1.msra.mxu0 0.0
          %685 = vmatprep.subr.mxu0 0.0
          %686 = vmatpush1.msra.mxu0 0.0
          %687 = vmatprep.subr.mxu0 0.0
          %688 = vmatpush1.msra.mxu0 0.0
          %689 = vmatprep.subr.mxu0 0.0
          %690 = vmatpush1.msra.mxu0 0.0
          %691 = vmatprep.subr.mxu0 0.0
          %692 = vmatpush1.msra.mxu0 0.0
          %693 = vmatprep.subr.mxu0 0.0
          %694 = vmatpush1.msra.mxu0 0.0
          %695 = vmatprep.subr.mxu0 0.0
          %696 = vmatpush1.msra.mxu0 0.0
          %697 = vmatprep.subr.mxu0 0.0
          %698 = vmatpush1.msra.mxu0 0.0
          %699 = vmatprep.subr.mxu0 0.0
          %700 = vmatpush1.msra.mxu0 0.0
          %701 = vmatprep.subr.mxu0 0.0
          %702 = vmatpush1.msra.mxu0 0.0
          %703 = vmatprep.subr.mxu0 0.0
          %704 = vmatpush1.msra.mxu0 0.0
          %705 = vmatprep.subr.mxu0 0.0
          %706 = vmatpush1.msra.mxu0 0.0
          %707 = vmatprep.mubr.f32.mxu0 0.0
          %708 = vmatmul.mubr.f32.gmra.mrb[0].mxu0 %v632
          %v709 = vpop.f32.mrb[0].mxu0
          %v710 = vadd.f32 %v614, %v709
          %v711 = vpop.f32.mrb[0].mxu0
          %v712 = vadd.f32 %v614, %v711
          %713 = vmatprep.mubr.f32.mxu0 0.0
          %714 = vmatmul.mubr.f32.gmra.mrb[0].mxu0 %v635
          %v715 = vpop.f32.mrb[0].mxu0
          %v716 = vadd.f32 %v619, %v715
          %v717 = vpop.f32.mrb[0].mxu0
          %v718 = vadd.f32 %v619, %v717
          %719 = vmatprep.mubr.f32.mxu0 0.0
          %720 = vmatmul.mubr.f32.gmra.mrb[0].mxu0 %v638
          %v721 = vpop.f32.mrb[0].mxu0
          %v722 = vadd.f32 %v624, %v721
          %v723 = vpop.f32.mrb[0].mxu0
          %v724 = vadd.f32 %v624, %v723
          %725 = vmatprep.mubr.f32.mxu0 0.0
          %726 = vmatmul.mubr.f32.gmra.mrb[0].mxu0 %v641
          %v727 = vpop.f32.mrb[0].mxu0
          %v728 = vadd.f32 %v629, %v727
          %v729 = vpop.f32.mrb[0].mxu0
          %v730 = vadd.f32 %v629, %v729
          %731 = vdwg.mxu0
          %732 = vst [vmem:[#allocation4] sm:$0xff] %v710
          %733 = vst [vmem:[#allocation4 + $0x8] sm:$0xff] %v712
          %734 = vst [vmem:[#allocation4 + $0x10] sm:$0xff] %v716
          %735 = vst [vmem:[#allocation4 + $0x18] sm:$0xff] %v718
          %736 = vst [vmem:[#allocation4 + $0x20] sm:$0xff] %v722
          %737 = vst [vmem:[#allocation4 + $0x28] sm:$0xff] %v724
          %738 = vst [vmem:[#allocation4 + $0x30] sm:$0xff] %v728
          %739 = vst [vmem:[#allocation4 + $0x38] sm:$0xff] %v730
        $region64: #{tpu_custom_call.1} parent=51 // pred_fallthru
          _
        %s740 = smul.u32 %s38, 128
        %s741 = sshra.s32 %s740, 7
        %s742 = sand.u32 %s740, 127
        %s743 = smul.addr %s741, 8
        %s744 = scalar_lea.vmem [#allocation2], %s743
        %v745 = vld [vmem:[%s744] sm:$0xff]
        %v746 = vld [vmem:[#allocation3] sm:$0xff]
        %v747 = vld [vmem:[#allocation3 + $0x8] sm:$0xff]
        %748 = vxpose.xlu0.b32.start [1/16] %v745, 128
        %749 = vxpose.xlu0.b32.cont [2/16] 0.0, 128
        %750 = vxpose.xlu0.b32.cont [3/16] 0.0, 128
        %751 = vxpose.xlu0.b32.cont [4/16] 0.0, 128
        %752 = vxpose.xlu0.b32.cont [5/16] 0.0, 128
        %753 = vxpose.xlu0.b32.cont [6/16] 0.0, 128
        %754 = vxpose.xlu0.b32.cont [7/16] 0.0, 128
        %755 = vxpose.xlu0.b32.cont [8/16] 0.0, 128
        %756 = vxpose.xlu0.b32.cont [9/16] 0.0, 128
        %757 = vxpose.xlu0.b32.cont [10/16] 0.0, 128
        %758 = vxpose.xlu0.b32.cont [11/16] 0.0, 128
        %759 = vxpose.xlu0.b32.cont [12/16] 0.0, 128
        %760 = vxpose.xlu0.b32.cont [13/16] 0.0, 128
        %761 = vxpose.xlu0.b32.cont [14/16] 0.0, 128
        %762 = vxpose.xlu0.b32.cont [15/16] 0.0, 128
        %763 = vxpose.xlu0.b32.end [16/16] 0.0, 128
        %v764 = vpop.trf.xlu0
        %v765 = vpop.trf.xlu0
        %v766 = vpop.trf.xlu0
        %v767 = vpop.trf.xlu0
        %v768 = vpop.trf.xlu0
        %v769 = vpop.trf.xlu0
        %v770 = vpop.trf.xlu0
        %v771 = vpop.trf.xlu0
        %v772 = vpop.trf.xlu0
        %v773 = vpop.trf.xlu0
        %v774 = vpop.trf.xlu0
        %v775 = vpop.trf.xlu0
        %v776 = vpop.trf.xlu0
        %v777 = vpop.trf.xlu0
        %v778 = vpop.trf.xlu0
        %v779 = vpop.trf.xlu0
        %vm780 = vcmask 64512
        %v782 = vsel %vm780, %v764, 0
        %v785 = vsel %vm780, %v765, 0
        %v788 = vsel %vm780, %v766, 0
        %v791 = vsel %vm780, %v767, 0
        %v794 = vsel %vm780, %v768, 0
        %v797 = vsel %vm780, %v769, 0
        %v800 = vsel %vm780, %v770, 0
        %v803 = vsel %vm780, %v771, 0
        %v806 = vsel %vm780, %v772, 0
        %v809 = vsel %vm780, %v773, 0
        %v812 = vsel %vm780, %v774, 0
        %v815 = vsel %vm780, %v775, 0
        %v818 = vsel %vm780, %v776, 0
        %v821 = vsel %vm780, %v777, 0
        %v824 = vsel %vm780, %v778, 0
        %v827 = vsel %vm780, %v779, 0
        %829 = vmatprep.subr.mxu0 %v747
        %830 = vmatpush1.msra.mxu0 %v746
        %831 = vmatprep.subr.mxu0 0.0
        %832 = vmatpush1.msra.mxu0 0.0
        %833 = vmatprep.subr.mxu0 0.0
        %834 = vmatpush1.msra.mxu0 0.0
        %835 = vmatprep.subr.mxu0 0.0
        %836 = vmatpush1.msra.mxu0 0.0
        %837 = vmatprep.subr.mxu0 0.0
        %838 = vmatpush1.msra.mxu0 0.0
        %839 = vmatprep.subr.mxu0 0.0
        %840 = vmatpush1.msra.mxu0 0.0
        %841 = vmatprep.subr.mxu0 0.0
        %842 = vmatpush1.msra.mxu0 0.0
        %843 = vmatprep.subr.mxu0 0.0
        %844 = vmatpush1.msra.mxu0 0.0
        %845 = vmatprep.subr.mxu0 0.0
        %846 = vmatpush1.msra.mxu0 0.0
        %847 = vmatprep.subr.mxu0 0.0
        %848 = vmatpush1.msra.mxu0 0.0
        %849 = vmatprep.subr.mxu0 0.0
        %850 = vmatpush1.msra.mxu0 0.0
        %851 = vmatprep.subr.mxu0 0.0
        %852 = vmatpush1.msra.mxu0 0.0
        %853 = vmatprep.subr.mxu0 0.0
        %854 = vmatpush1.msra.mxu0 0.0
        %855 = vmatprep.subr.mxu0 0.0
        %856 = vmatpush1.msra.mxu0 0.0
        %857 = vmatprep.subr.mxu0 0.0
        %858 = vmatpush1.msra.mxu0 0.0
        %859 = vmatprep.subr.mxu0 0.0
        %860 = vmatpush1.msra.mxu0 0.0
        %861 = vmatprep.subr.mxu0 0.0
        %862 = vmatpush1.msra.mxu0 0.0
        %863 = vmatprep.subr.mxu0 0.0
        %864 = vmatpush1.msra.mxu0 0.0
        %865 = vmatprep.subr.mxu0 0.0
        %866 = vmatpush1.msra.mxu0 0.0
        %867 = vmatprep.subr.mxu0 0.0
        %868 = vmatpush1.msra.mxu0 0.0
        %869 = vmatprep.subr.mxu0 0.0
        %870 = vmatpush1.msra.mxu0 0.0
        %871 = vmatprep.subr.mxu0 0.0
        %872 = vmatpush1.msra.mxu0 0.0
        %873 = vmatprep.subr.mxu0 0.0
        %874 = vmatpush1.msra.mxu0 0.0
        %875 = vmatprep.subr.mxu0 0.0
        %876 = vmatpush1.msra.mxu0 0.0
        %877 = vmatprep.subr.mxu0 0.0
        %878 = vmatpush1.msra.mxu0 0.0
        %879 = vmatprep.subr.mxu0 0.0
        %880 = vmatpush1.msra.mxu0 0.0
        %881 = vmatprep.subr.mxu0 0.0
        %882 = vmatpush1.msra.mxu0 0.0
        %883 = vmatprep.subr.mxu0 0.0
        %884 = vmatpush1.msra.mxu0 0.0
        %885 = vmatprep.subr.mxu0 0.0
        %886 = vmatpush1.msra.mxu0 0.0
        %887 = vmatprep.subr.mxu0 0.0
        %888 = vmatpush1.msra.mxu0 0.0
        %889 = vmatprep.subr.mxu0 0.0
        %890 = vmatpush1.msra.mxu0 0.0
        %891 = vmatprep.subr.mxu0 0.0
        %892 = vmatpush1.msra.mxu0 0.0
        %893 = vmatprep.mubr.f32.mxu0 0.0
        %894 = vmatmul.mubr.f32.gmra.mrb[0].mxu0 %v782
        %v895 = vpop.f32.mrb[0].mxu0
        %v896 = vadd.f32 0.0, %v895
        %v897 = vpop.f32.mrb[0].mxu0
        %v898 = vadd.f32 0.0, %v897
        %899 = vmatprep.mubr.f32.mxu0 0.0
        %900 = vmatmul.mubr.f32.gmra.mrb[0].mxu0 %v785
        %v901 = vpop.f32.mrb[0].mxu0
        %v902 = vadd.f32 0.0, %v901
        %v903 = vpop.f32.mrb[0].mxu0
        %v904 = vadd.f32 0.0, %v903
        %905 = vmatprep.mubr.f32.mxu0 0.0
        %906 = vmatmul.mubr.f32.gmra.mrb[0].mxu0 %v788
        %v907 = vpop.f32.mrb[0].mxu0
        %v908 = vadd.f32 0.0, %v907
        %v909 = vpop.f32.mrb[0].mxu0
        %v910 = vadd.f32 0.0, %v909
        %911 = vmatprep.mubr.f32.mxu0 0.0
        %912 = vmatmul.mubr.f32.gmra.mrb[0].mxu0 %v791
        %v913 = vpop.f32.mrb[0].mxu0
        %v914 = vadd.f32 0.0, %v913
        %v915 = vpop.f32.mrb[0].mxu0
        %v916 = vadd.f32 0.0, %v915
        %917 = vmatprep.mubr.f32.mxu0 0.0
        %918 = vmatmul.mubr.f32.gmra.mrb[0].mxu0 %v794
        %v919 = vpop.f32.mrb[0].mxu0
        %v920 = vadd.f32 0.0, %v919
        %v921 = vpop.f32.mrb[0].mxu0
        %v922 = vadd.f32 0.0, %v921
        %923 = vmatprep.mubr.f32.mxu0 0.0
        %924 = vmatmul.mubr.f32.gmra.mrb[0].mxu0 %v797
        %v925 = vpop.f32.mrb[0].mxu0
        %v926 = vadd.f32 0.0, %v925
        %v927 = vpop.f32.mrb[0].mxu0
        %v928 = vadd.f32 0.0, %v927
        %929 = vmatprep.mubr.f32.mxu0 0.0
        %930 = vmatmul.mubr.f32.gmra.mrb[0].mxu0 %v800
        %v931 = vpop.f32.mrb[0].mxu0
        %v932 = vadd.f32 0.0, %v931
        %v933 = vpop.f32.mrb[0].mxu0
        %v934 = vadd.f32 0.0, %v933
        %935 = vmatprep.mubr.f32.mxu0 0.0
        %936 = vmatmul.mubr.f32.gmra.mrb[0].mxu0 %v803
        %v937 = vpop.f32.mrb[0].mxu0
        %v938 = vadd.f32 0.0, %v937
        %v939 = vpop.f32.mrb[0].mxu0
        %v940 = vadd.f32 0.0, %v939
        %941 = vmatprep.mubr.f32.mxu0 0.0
        %942 = vmatmul.mubr.f32.gmra.mrb[0].mxu0 %v806
        %v943 = vpop.f32.mrb[0].mxu0
        %v944 = vadd.f32 0.0, %v943
        %v945 = vpop.f32.mrb[0].mxu0
        %v946 = vadd.f32 0.0, %v945
        %947 = vmatprep.mubr.f32.mxu0 0.0
        %948 = vmatmul.mubr.f32.gmra.mrb[0].mxu0 %v809
        %v949 = vpop.f32.mrb[0].mxu0
        %v950 = vadd.f32 0.0, %v949
        %v951 = vpop.f32.mrb[0].mxu0
        %v952 = vadd.f32 0.0, %v951
        %953 = vmatprep.mubr.f32.mxu0 0.0
        %954 = vmatmul.mubr.f32.gmra.mrb[0].mxu0 %v812
        %v955 = vpop.f32.mrb[0].mxu0
        %v956 = vadd.f32 0.0, %v955
        %v957 = vpop.f32.mrb[0].mxu0
        %v958 = vadd.f32 0.0, %v957
        %959 = vmatprep.mubr.f32.mxu0 0.0
        %960 = vmatmul.mubr.f32.gmra.mrb[0].mxu0 %v815
        %v961 = vpop.f32.mrb[0].mxu0
        %v962 = vadd.f32 0.0, %v961
        %v963 = vpop.f32.mrb[0].mxu0
        %v964 = vadd.f32 0.0, %v963
        %965 = vmatprep.mubr.f32.mxu0 0.0
        %966 = vmatmul.mubr.f32.gmra.mrb[0].mxu0 %v818
        %v967 = vpop.f32.mrb[0].mxu0
        %v968 = vadd.f32 0.0, %v967
        %v969 = vpop.f32.mrb[0].mxu0
        %v970 = vadd.f32 0.0, %v969
        %971 = vmatprep.mubr.f32.mxu0 0.0
        %972 = vmatmul.mubr.f32.gmra.mrb[0].mxu0 %v821
        %v973 = vpop.f32.mrb[0].mxu0
        %v974 = vadd.f32 0.0, %v973
        %v975 = vpop.f32.mrb[0].mxu0
        %v976 = vadd.f32 0.0, %v975
        %977 = vmatprep.mubr.f32.mxu0 0.0
        %978 = vmatmul.mubr.f32.gmra.mrb[0].mxu0 %v824
        %v979 = vpop.f32.mrb[0].mxu0
        %v980 = vadd.f32 0.0, %v979
        %v981 = vpop.f32.mrb[0].mxu0
        %v982 = vadd.f32 0.0, %v981
        %983 = vmatprep.mubr.f32.mxu0 0.0
        %984 = vmatmul.mubr.f32.gmra.mrb[0].mxu0 %v827
        %v985 = vpop.f32.mrb[0].mxu0
        %v986 = vadd.f32 0.0, %v985
        %v987 = vpop.f32.mrb[0].mxu0
        %v988 = vadd.f32 0.0, %v987
        %989 = vdwg.mxu0
        %v990 = vmax.f32 %v896, %v898
        %991 = vmax.xlane.f32.xlu0 %v990
        %v992 = vpop.xlane.xlu0 %991
        %v993 = vmax.f32 %v902, %v904
        %994 = vmax.xlane.f32.xlu0 %v993
        %v995 = vpop.xlane.xlu0 %994
        %v996 = vmax.f32 %v908, %v910
        %997 = vmax.xlane.f32.xlu0 %v996
        %v998 = vpop.xlane.xlu0 %997
        %v999 = vmax.f32 %v914, %v916
        %1000 = vmax.xlane.f32.xlu0 %v999
        %v1001 = vpop.xlane.xlu0 %1000
        %v1002 = vmax.f32 %v920, %v922
        %1003 = vmax.xlane.f32.xlu0 %v1002
        %v1004 = vpop.xlane.xlu0 %1003
        %v1005 = vmax.f32 %v926, %v928
        %1006 = vmax.xlane.f32.xlu0 %v1005
        %v1007 = vpop.xlane.xlu0 %1006
        %v1008 = vmax.f32 %v932, %v934
        %1009 = vmax.xlane.f32.xlu0 %v1008
        %v1010 = vpop.xlane.xlu0 %1009
        %v1011 = vmax.f32 %v938, %v940
        %1012 = vmax.xlane.f32.xlu0 %v1011
        %v1013 = vpop.xlane.xlu0 %1012
        %v1014 = vmax.f32 %v944, %v946
        %1015 = vmax.xlane.f32.xlu0 %v1014
        %v1016 = vpop.xlane.xlu0 %1015
        %v1017 = vmax.f32 %v950, %v952
        %1018 = vmax.xlane.f32.xlu0 %v1017
        %v1019 = vpop.xlane.xlu0 %1018
        %v1020 = vmax.f32 %v956, %v958
        %1021 = vmax.xlane.f32.xlu0 %v1020
        %v1022 = vpop.xlane.xlu0 %1021
        %v1023 = vmax.f32 %v962, %v964
        %1024 = vmax.xlane.f32.xlu0 %v1023
        %v1025 = vpop.xlane.xlu0 %1024
        %v1026 = vmax.f32 %v968, %v970
        %1027 = vmax.xlane.f32.xlu0 %v1026
        %v1028 = vpop.xlane.xlu0 %1027
        %v1029 = vmax.f32 %v974, %v976
        %1030 = vmax.xlane.f32.xlu0 %v1029
        %v1031 = vpop.xlane.xlu0 %1030
        %v1032 = vmax.f32 %v980, %v982
        %1033 = vmax.xlane.f32.xlu0 %v1032
        %v1034 = vpop.xlane.xlu0 %1033
        %v1035 = vmax.f32 %v986, %v988
        %1036 = vmax.xlane.f32.xlu0 %v1035
        %v1037 = vpop.xlane.xlu0 %1036
        %v1038 = vsub.f32 %v896, %v992
        %v1039 = vsub.f32 %v898, %v992
        %v1040 = vsub.f32 %v902, %v995
        %v1041 = vsub.f32 %v904, %v995
        %v1042 = vsub.f32 %v908, %v998
        %v1043 = vsub.f32 %v910, %v998
        %v1044 = vsub.f32 %v914, %v1001
        %v1045 = vsub.f32 %v916, %v1001
        %v1046 = vsub.f32 %v920, %v1004
        %v1047 = vsub.f32 %v922, %v1004
        %v1048 = vsub.f32 %v926, %v1007
        %v1049 = vsub.f32 %v928, %v1007
        %v1050 = vsub.f32 %v932, %v1010
        %v1051 = vsub.f32 %v934, %v1010
        %v1052 = vsub.f32 %v938, %v1013
        %v1053 = vsub.f32 %v940, %v1013
        %v1054 = vsub.f32 %v944, %v1016
        %v1055 = vsub.f32 %v946, %v1016
        %v1056 = vsub.f32 %v950, %v1019
        %v1057 = vsub.f32 %v952, %v1019
        %v1058 = vsub.f32 %v956, %v1022
        %v1059 = vsub.f32 %v958, %v1022
        %v1060 = vsub.f32 %v962, %v1025
        %v1061 = vsub.f32 %v964, %v1025
        %v1062 = vsub.f32 %v968, %v1028
        %v1063 = vsub.f32 %v970, %v1028
        %v1064 = vsub.f32 %v974, %v1031
        %v1065 = vsub.f32 %v976, %v1031
        %v1066 = vsub.f32 %v980, %v1034
        %v1067 = vsub.f32 %v982, %v1034
        %v1068 = vsub.f32 %v986, %v1037
        %v1069 = vsub.f32 %v988, %v1037
        %v1070 = vmul.f32 %v1038, 1.442695
        %v1071 = vpow.pop %v1070
        %v1072 = vmul.f32 %v1039, 1.442695
        %v1073 = vpow.pop %v1072
        %v1074 = vmul.f32 %v1040, 1.442695
        %v1075 = vpow.pop %v1074
        %v1076 = vmul.f32 %v1041, 1.442695
        %v1077 = vpow.pop %v1076
        %v1078 = vmul.f32 %v1042, 1.442695
        %v1079 = vpow.pop %v1078
        %v1080 = vmul.f32 %v1043, 1.442695
        %v1081 = vpow.pop %v1080
        %v1082 = vmul.f32 %v1044, 1.442695
        %v1083 = vpow.pop %v1082
        %v1084 = vmul.f32 %v1045, 1.442695
        %v1085 = vpow.pop %v1084
        %v1086 = vmul.f32 %v1046, 1.442695
        %v1087 = vpow.pop %v1086
        %v1088 = vmul.f32 %v1047, 1.442695
        %v1089 = vpow.pop %v1088
        %v1090 = vmul.f32 %v1048, 1.442695
        %v1091 = vpow.pop %v1090
        %v1092 = vmul.f32 %v1049, 1.442695
        %v1093 = vpow.pop %v1092
        %v1094 = vmul.f32 %v1050, 1.442695
        %v1095 = vpow.pop %v1094
        %v1096 = vmul.f32 %v1051, 1.442695
        %v1097 = vpow.pop %v1096
        %v1098 = vmul.f32 %v1052, 1.442695
        %v1099 = vpow.pop %v1098
        %v1100 = vmul.f32 %v1053, 1.442695
        %v1101 = vpow.pop %v1100
        %v1102 = vmul.f32 %v1054, 1.442695
        %v1103 = vpow.pop %v1102
        %v1104 = vmul.f32 %v1055, 1.442695
        %v1105 = vpow.pop %v1104
        %v1106 = vmul.f32 %v1056, 1.442695
        %v1107 = vpow.pop %v1106
        %v1108 = vmul.f32 %v1057, 1.442695
        %v1109 = vpow.pop %v1108
        %v1110 = vmul.f32 %v1058, 1.442695
        %v1111 = vpow.pop %v1110
        %v1112 = vmul.f32 %v1059, 1.442695
        %v1113 = vpow.pop %v1112
        %v1114 = vmul.f32 %v1060, 1.442695
        %v1115 = vpow.pop %v1114
        %v1116 = vmul.f32 %v1061, 1.442695
        %v1117 = vpow.pop %v1116
        %v1118 = vmul.f32 %v1062, 1.442695
        %v1119 = vpow.pop %v1118
        %v1120 = vmul.f32 %v1063, 1.442695
        %v1121 = vpow.pop %v1120
        %v1122 = vmul.f32 %v1064, 1.442695
        %v1123 = vpow.pop %v1122
        %v1124 = vmul.f32 %v1065, 1.442695
        %v1125 = vpow.pop %v1124
        %v1126 = vmul.f32 %v1066, 1.442695
        %v1127 = vpow.pop %v1126
        %v1128 = vmul.f32 %v1067, 1.442695
        %v1129 = vpow.pop %v1128
        %v1130 = vmul.f32 %v1068, 1.442695
        %v1131 = vpow.pop %v1130
        %v1132 = vmul.f32 %v1069, 1.442695
        %v1133 = vpow.pop %v1132
        %v1134 = vadd.f32 %v1071, %v1073
        %1135 = vadd.xlane.f32.xlu0 %v1134
        %v1136 = vpop.xlane.xlu0 %1135
        %v1137 = vadd.f32 %v1075, %v1077
        %1138 = vadd.xlane.f32.xlu0 %v1137
        %v1139 = vpop.xlane.xlu0 %1138
        %v1140 = vadd.f32 %v1079, %v1081
        %1141 = vadd.xlane.f32.xlu0 %v1140
        %v1142 = vpop.xlane.xlu0 %1141
        %v1143 = vadd.f32 %v1083, %v1085
        %1144 = vadd.xlane.f32.xlu0 %v1143
        %v1145 = vpop.xlane.xlu0 %1144
        %v1146 = vadd.f32 %v1087, %v1089
        %1147 = vadd.xlane.f32.xlu0 %v1146
        %v1148 = vpop.xlane.xlu0 %1147
        %v1149 = vadd.f32 %v1091, %v1093
        %1150 = vadd.xlane.f32.xlu0 %v1149
        %v1151 = vpop.xlane.xlu0 %1150
        %v1152 = vadd.f32 %v1095, %v1097
        %1153 = vadd.xlane.f32.xlu0 %v1152
        %v1154 = vpop.xlane.xlu0 %1153
        %v1155 = vadd.f32 %v1099, %v1101
        %1156 = vadd.xlane.f32.xlu0 %v1155
        %v1157 = vpop.xlane.xlu0 %1156
        %v1158 = vadd.f32 %v1103, %v1105
        %1159 = vadd.xlane.f32.xlu0 %v1158
        %v1160 = vpop.xlane.xlu0 %1159
        %v1161 = vadd.f32 %v1107, %v1109
        %1162 = vadd.xlane.f32.xlu0 %v1161
        %v1163 = vpop.xlane.xlu0 %1162
        %v1164 = vadd.f32 %v1111, %v1113
        %1165 = vadd.xlane.f32.xlu0 %v1164
        %v1166 = vpop.xlane.xlu0 %1165
        %v1167 = vadd.f32 %v1115, %v1117
        %1168 = vadd.xlane.f32.xlu0 %v1167
        %v1169 = vpop.xlane.xlu0 %1168
        %v1170 = vadd.f32 %v1119, %v1121
        %1171 = vadd.xlane.f32.xlu0 %v1170
        %v1172 = vpop.xlane.xlu0 %1171
        %v1173 = vadd.f32 %v1123, %v1125
        %1174 = vadd.xlane.f32.xlu0 %v1173
        %v1175 = vpop.xlane.xlu0 %1174
        %v1176 = vadd.f32 %v1127, %v1129
        %1177 = vadd.xlane.f32.xlu0 %v1176
        %v1178 = vpop.xlane.xlu0 %1177
        %v1179 = vadd.f32 %v1131, %v1133
        %1180 = vadd.xlane.f32.xlu0 %v1179
        %v1181 = vpop.xlane.xlu0 %1180
        %v1182 = vrcp.pop %v1136
        %v1183 = vrcp.pop %v1139
        %v1184 = vrcp.pop %v1142
        %v1185 = vrcp.pop %v1145
        %v1186 = vrcp.pop %v1148
        %v1187 = vrcp.pop %v1151
        %v1188 = vrcp.pop %v1154
        %v1189 = vrcp.pop %v1157
        %v1190 = vrcp.pop %v1160
        %v1191 = vrcp.pop %v1163
        %v1192 = vrcp.pop %v1166
        %v1193 = vrcp.pop %v1169
        %v1194 = vrcp.pop %v1172
        %v1195 = vrcp.pop %v1175
        %v1196 = vrcp.pop %v1178
        %v1197 = vrcp.pop %v1181
        %v1198 = vmul.f32 %v1071, %v1182
        %v1199 = vmul.f32 %v1073, %v1182
        %v1200 = vmul.f32 %v1075, %v1183
        %v1201 = vmul.f32 %v1077, %v1183
        %v1202 = vmul.f32 %v1079, %v1184
        %v1203 = vmul.f32 %v1081, %v1184
        %v1204 = vmul.f32 %v1083, %v1185
        %v1205 = vmul.f32 %v1085, %v1185
        %v1206 = vmul.f32 %v1087, %v1186
        %v1207 = vmul.f32 %v1089, %v1186
        %v1208 = vmul.f32 %v1091, %v1187
        %v1209 = vmul.f32 %v1093, %v1187
        %v1210 = vmul.f32 %v1095, %v1188
        %v1211 = vmul.f32 %v1097, %v1188
        %v1212 = vmul.f32 %v1099, %v1189
        %v1213 = vmul.f32 %v1101, %v1189
        %v1214 = vmul.f32 %v1103, %v1190
        %v1215 = vmul.f32 %v1105, %v1190
        %v1216 = vmul.f32 %v1107, %v1191
        %v1217 = vmul.f32 %v1109, %v1191
        %v1218 = vmul.f32 %v1111, %v1192
        %v1219 = vmul.f32 %v1113, %v1192
        %v1220 = vmul.f32 %v1115, %v1193
        %v1221 = vmul.f32 %v1117, %v1193
        %v1222 = vmul.f32 %v1119, %v1194
        %v1223 = vmul.f32 %v1121, %v1194
        %v1224 = vmul.f32 %v1123, %v1195
        %v1225 = vmul.f32 %v1125, %v1195
        %v1226 = vmul.f32 %v1127, %v1196
        %v1227 = vmul.f32 %v1129, %v1196
        %v1228 = vmul.f32 %v1131, %v1197
        %v1229 = vmul.f32 %v1133, %v1197
        %v1230 = vld [vmem:[#allocation4] sm:$0xff]
        %v1231 = vld [vmem:[#allocation4 + $0x8] sm:$0xff]
        %v1232 = vld [vmem:[#allocation4 + $0x10] sm:$0xff]
        %v1233 = vld [vmem:[#allocation4 + $0x18] sm:$0xff]
        %v1234 = vld [vmem:[#allocation4 + $0x20] sm:$0xff]
        %v1235 = vld [vmem:[#allocation4 + $0x28] sm:$0xff]
        %v1236 = vld [vmem:[#allocation4 + $0x30] sm:$0xff]
        %v1237 = vld [vmem:[#allocation4 + $0x38] sm:$0xff]
        %1238 = vmatprep.subr.mxu0 %v1199
        %1239 = vmatpush1.xpose.msra.mxu0 %v1198
        %1240 = vmatprep.subr.mxu0 %v1201
        %1241 = vmatpush1.xpose.msra.mxu0 %v1200
        %1242 = vmatprep.subr.mxu0 %v1203
        %1243 = vmatpush1.xpose.msra.mxu0 %v1202
        %1244 = vmatprep.subr.mxu0 %v1205
        %1245 = vmatpush1.xpose.msra.mxu0 %v1204
        %1246 = vmatprep.subr.mxu0 %v1207
        %1247 = vmatpush1.xpose.msra.mxu0 %v1206
        %1248 = vmatprep.subr.mxu0 %v1209
        %1249 = vmatpush1.xpose.msra.mxu0 %v1208
        %1250 = vmatprep.subr.mxu0 %v1211
        %1251 = vmatpush1.xpose.msra.mxu0 %v1210
        %1252 = vmatprep.subr.mxu0 %v1213
        %1253 = vmatpush1.xpose.msra.mxu0 %v1212
        %1254 = vmatprep.subr.mxu0 %v1215
        %1255 = vmatpush1.xpose.msra.mxu0 %v1214
        %1256 = vmatprep.subr.mxu0 %v1217
        %1257 = vmatpush1.xpose.msra.mxu0 %v1216
        %1258 = vmatprep.subr.mxu0 %v1219
        %1259 = vmatpush1.xpose.msra.mxu0 %v1218
        %1260 = vmatprep.subr.mxu0 %v1221
        %1261 = vmatpush1.xpose.msra.mxu0 %v1220
        %1262 = vmatprep.subr.mxu0 %v1223
        %1263 = vmatpush1.xpose.msra.mxu0 %v1222
        %1264 = vmatprep.subr.mxu0 %v1225
        %1265 = vmatpush1.xpose.msra.mxu0 %v1224
        %1266 = vmatprep.subr.mxu0 %v1227
        %1267 = vmatpush1.xpose.msra.mxu0 %v1226
        %1268 = vmatprep.subr.mxu0 %v1229
        %1269 = vmatpush1.xpose.msra.mxu0 %v1228
        %1270 = vmatprep.subr.mxu0 0.0
        %1271 = vmatpush1.xpose.msra.mxu0 0.0
        %1272 = vmatprep.subr.mxu0 0.0
        %1273 = vmatpush1.xpose.msra.mxu0 0.0
        %1274 = vmatprep.subr.mxu0 0.0
        %1275 = vmatpush1.xpose.msra.mxu0 0.0
        %1276 = vmatprep.subr.mxu0 0.0
        %1277 = vmatpush1.xpose.msra.mxu0 0.0
        %1278 = vmatprep.subr.mxu0 0.0
        %1279 = vmatpush1.xpose.msra.mxu0 0.0
        %1280 = vmatprep.subr.mxu0 0.0
        %1281 = vmatpush1.xpose.msra.mxu0 0.0
        %1282 = vmatprep.subr.mxu0 0.0
        %1283 = vmatpush1.xpose.msra.mxu0 0.0
        %1284 = vmatprep.subr.mxu0 0.0
        %1285 = vmatpush1.xpose.msra.mxu0 0.0
        %1286 = vmatprep.subr.mxu0 0.0
        %1287 = vmatpush1.xpose.msra.mxu0 0.0
        %1288 = vmatprep.subr.mxu0 0.0
        %1289 = vmatpush1.xpose.msra.mxu0 0.0
        %1290 = vmatprep.subr.mxu0 0.0
        %1291 = vmatpush1.xpose.msra.mxu0 0.0
        %1292 = vmatprep.subr.mxu0 0.0
        %1293 = vmatpush1.xpose.msra.mxu0 0.0
        %1294 = vmatprep.subr.mxu0 0.0
        %1295 = vmatpush1.xpose.msra.mxu0 0.0
        %1296 = vmatprep.subr.mxu0 0.0
        %1297 = vmatpush1.xpose.msra.mxu0 0.0
        %1298 = vmatprep.subr.mxu0 0.0
        %1299 = vmatpush1.xpose.msra.mxu0 0.0
        %1300 = vmatprep.subr.mxu0 0.0
        %1301 = vmatpush1.xpose.msra.mxu0 0.0
        %1302 = vmatprep.mubr.f32.mxu0 %v1231
        %1303 = vmatmul.mubr.f32.gmra.mrb[0].mxu0 %v1230
        %v1304 = vpop.f32.mrb[0].mxu0
        %v1305 = vadd.f32 0.0, %v1304
        %v1306 = vpop.f32.mrb[0].mxu0
        %1307 = vmatprep.mubr.f32.mxu0 %v1233
        %1308 = vmatmul.mubr.f32.gmra.mrb[0].mxu0 %v1232
        %v1309 = vpop.f32.mrb[0].mxu0
        %v1310 = vadd.f32 0.0, %v1309
        %v1311 = vpop.f32.mrb[0].mxu0
        %1312 = vmatprep.mubr.f32.mxu0 %v1235
        %1313 = vmatmul.mubr.f32.gmra.mrb[0].mxu0 %v1234
        %v1314 = vpop.f32.mrb[0].mxu0
        %v1315 = vadd.f32 0.0, %v1314
        %v1316 = vpop.f32.mrb[0].mxu0
        %1317 = vmatprep.mubr.f32.mxu0 %v1237
        %1318 = vmatmul.mubr.f32.gmra.mrb[0].mxu0 %v1236
        %v1319 = vpop.f32.mrb[0].mxu0
        %v1320 = vadd.f32 0.0, %v1319
        %v1321 = vpop.f32.mrb[0].mxu0
        %1322 = vdwg.mxu0
        %1323 = vst [vmem:[%s410] sm:$0xff] %v1305
        %1324 = vst [vmem:[%s410 + $0x8] sm:$0xff] %v1310
        %1325 = vst [vmem:[%s410 + $0x10] sm:$0xff] %v1315
        %1326 = vst [vmem:[%s410 + $0x18] sm:$0xff] %v1320
        %1327 = vst [vmem:[%s417] sm:$0xff] %v1198
        %1328 = vst [vmem:[%s417 + $0x8] sm:$0xff] %v1199
        %1329 = vst [vmem:[%s417 + $0x10] sm:$0xff] %v1200
        %1330 = vst [vmem:[%s417 + $0x18] sm:$0xff] %v1201
        %1331 = vst [vmem:[%s417 + $0x20] sm:$0xff] %v1202
        %1332 = vst [vmem:[%s417 + $0x28] sm:$0xff] %v1203
        %1333 = vst [vmem:[%s417 + $0x30] sm:$0xff] %v1204
        %1334 = vst [vmem:[%s417 + $0x38] sm:$0xff] %v1205
        %1335 = vst [vmem:[%s417 + $0x40] sm:$0xff] %v1206
        %1336 = vst [vmem:[%s417 + $0x48] sm:$0xff] %v1207
        %1337 = vst [vmem:[%s417 + $0x50] sm:$0xff] %v1208
        %1338 = vst [vmem:[%s417 + $0x58] sm:$0xff] %v1209
        %1339 = vst [vmem:[%s417 + $0x60] sm:$0xff] %v1210
        %1340 = vst [vmem:[%s417 + $0x68] sm:$0xff] %v1211
        %1341 = vst [vmem:[%s417 + $0x70] sm:$0xff] %v1212
        %1342 = vst [vmem:[%s417 + $0x78] sm:$0xff] %v1213
        %1343 = vst [vmem:[%s417 + $0x80] sm:$0xff] %v1214
        %1344 = vst [vmem:[%s417 + $0x88] sm:$0xff] %v1215
        %1345 = vst [vmem:[%s417 + $0x90] sm:$0xff] %v1216
        %1346 = vst [vmem:[%s417 + $0x98] sm:$0xff] %v1217
        %1347 = vst [vmem:[%s417 + $0xa0] sm:$0xff] %v1218
        %1348 = vst [vmem:[%s417 + $0xa8] sm:$0xff] %v1219
        %1349 = vst [vmem:[%s417 + $0xb0] sm:$0xff] %v1220
        %1350 = vst [vmem:[%s417 + $0xb8] sm:$0xff] %v1221
        %1351 = vst [vmem:[%s417 + $0xc0] sm:$0xff] %v1222
        %1352 = vst [vmem:[%s417 + $0xc8] sm:$0xff] %v1223
        %1353 = vst [vmem:[%s417 + $0xd0] sm:$0xff] %v1224
        %1354 = vst [vmem:[%s417 + $0xd8] sm:$0xff] %v1225
        %1355 = vst [vmem:[%s417 + $0xe0] sm:$0xff] %v1226
        %1356 = vst [vmem:[%s417 + $0xe8] sm:$0xff] %v1227
        %1357 = vst [vmem:[%s417 + $0xf0] sm:$0xff] %v1228
        %1358 = vst [vmem:[%s417 + $0xf8] sm:$0xff] %v1229
        %s1359 = sand.u32 %s233, 1
        %s1360 = scalar_lea.sflag [#allocation7], %s1359
        %s1361 = sand.u32 %s233, 1
        %s1362 = smul.addr %s1361, 32
        %s1363 = scalar_lea.vmem [#allocation10], %s1362
        %s1364 = sand.u32 %s261, 1
        %s1365 = scalar_lea.sflag [#allocation12], %s1364
        %s1366 = sand.u32 %s261, 1
        %s1367 = smul.addr %s1366, 256
        %s1368 = scalar_lea.vmem [#allocation11], %s1367
        // Predicated region
        $region65: #{tpu_custom_call.1} parent=51 // pred_check
          %p1369 = pneg %p243
        $region66: #{tpu_custom_call.1} parent=51 // pred_check_branch
          %1371 = sbr.rel (%p1369) target = $region68
        $region67: #{tpu_custom_call.1} parent=51 // pred_region
          %s1373 = ssub.s32 512, 512
          %1374 = vsyncadd %s1360, %s1373
          %s1375 = smul.addr %s37, 8
          %s1376 = sadd.s32 %s38, %s1375
          %s1377 = smul.addr %s1376, 128
          %s1378 = scalar_lea.hbm %s8, %s1377
          %s1379 = sshll.u32 %s1363, 4
          %s1380 = int_to_ptr.vmem [resolvable:$true] %s1379
          %1385 = dma.vmem_to_hbm [thread:$0]  %s1380, 512, %s1378, %s1360, 128, 256, 8
        $region68: #{tpu_custom_call.1} parent=51 // pred_fallthru
          _
        // Predicated region
        $region69: #{tpu_custom_call.1} parent=51 // pred_check
          %p1386 = pneg %p271
        $region70: #{tpu_custom_call.1} parent=51 // pred_check_branch
          %1388 = sbr.rel (%p1386) target = $region72
        $region71: #{tpu_custom_call.1} parent=51 // pred_region
          %s1389 = smul.u32 16, %s38
          %s1391 = ssub.s32 4096, 4096
          %1392 = vsyncadd %s1365, %s1391
          %s1393 = smul.addr %s1389, 2
          %s1394 = smul.addr %s37, 64
          %s1395 = sadd.s32 %s1393, %s1394
          %s1396 = smul.addr %s1395, 128
          %s1397 = scalar_lea.hbm %s9, %s1396
          %s1398 = sshll.u32 %s1368, 4
          %s1399 = int_to_ptr.vmem [resolvable:$true] %s1398
          %1404 = dma.vmem_to_hbm [thread:$0]  %s1399, 4096, %s1397, %s1365, 256, 256, 16
        $region72: #{tpu_custom_call.1} parent=51 // pred_fallthru
          _
      $region52: #{tpu_custom_call.1} parent=5 // pred_fallthru
        _
      %p1405 = scmp.le.s32.totalorder 2, %s28
      // Predicated region
      $region73: #{tpu_custom_call.1} parent=5 // pred_check
        %p1406 = pneg %p1405
      $region74: #{tpu_custom_call.1} parent=5 // pred_check_branch
        %1408 = sbr.rel (%p1406) target = $region76
      $region75: #{tpu_custom_call.1} parent=5 // pred_region
        %s1409 = ssub.s32 %s28, 2
        // Predicated region
        $region77: #{tpu_custom_call.1} parent=75 // pred_check
          %p1410 = pneg %p249
        $region78: #{tpu_custom_call.1} parent=75 // pred_check_branch
          %1412 = sbr.rel (%p1410) target = $region80
        $region79: #{tpu_custom_call.1} parent=75 // pred_region
          %s1413 = sand.u32 %s234, 1
          %s1414 = scalar_lea.sflag [#allocation7], %s1413
          %s1415 = sand.u32 %s234, 1
          %s1416 = smul.addr %s1415, 32
          %s1417 = scalar_lea.vmem [#allocation10], %s1416
          %1418 = dma.done %s1414, 512
        $region80: #{tpu_custom_call.1} parent=75 // pred_fallthru
          _
        // Predicated region
        $region81: #{tpu_custom_call.1} parent=75 // pred_check
          %p1419 = pneg %p277
        $region82: #{tpu_custom_call.1} parent=75 // pred_check_branch
          %1421 = sbr.rel (%p1419) target = $region84
        $region83: #{tpu_custom_call.1} parent=75 // pred_region
          %s1422 = sand.u32 %s262, 1
          %s1423 = scalar_lea.sflag [#allocation12], %s1422
          %s1424 = sand.u32 %s262, 1
          %s1425 = smul.addr %s1424, 256
          %s1426 = scalar_lea.vmem [#allocation11], %s1425
          %1427 = dma.done %s1423, 4096
        $region84: #{tpu_custom_call.1} parent=75 // pred_fallthru
          _
      $region76: #{tpu_custom_call.1} parent=5 // pred_fallthru
        _
    $region6: #{tpu_custom_call.1} parent=1 // loop_footer
      %s32 = sadd.s32 1, %s28
    $region7: #{tpu_custom_call.1} parent=1 // loop_footer_branch
      %27 = sbr.rel target = $region3
    $region8: #{tpu_custom_call.1} parent=1 // loop_exit
      _
    %1428 = vsyncpa [#allocation6], 1
    %s1429 = scalar_lea.sflag [#allocation6], 1
    %1430 = vsyncpa %s1429, 1
    %1431 = vsyncpa [#allocation9], 1
    %s1432 = scalar_lea.sflag [#allocation9], 1
    %1433 = vsyncpa %s1432, 1
    %1434 = vsyncpa [#allocation7], 1
    %s1435 = scalar_lea.sflag [#allocation7], 1
    %1436 = vsyncpa %s1435, 1
    %1437 = vsyncpa [#allocation12], 1
    %s1438 = scalar_lea.sflag [#allocation12], 1
    %1439 = vsyncpa %s1438, 1

</llo_original>
